<compile_context>
chip_gen: v6e
topology: v6e:2x2x1
jax: 0.10.0
libtpu: 0.0.40
codegen_flags: <defaults>
</compile_context>

<pallas_src>
import math

import jax
import jax.numpy as jnp
from jax.experimental import pallas as pl
from jax.experimental.pallas import tpu as pltpu

# Module-defined feature dims (from MethodGCN.__init__)
F_IN = 1433
H1 = 60
H2 = 30
N_CLASS = 7

HPAD = 128   # every hidden / class dim lane-padded to one vreg width
LANE = 128


def _round_up(v, m):
    return (v + m - 1) // m * m


# --- pipeline_mode support probe (single-buffer constant-index operands) -----
def _supports_pipeline_mode():
    try:
        pl.BlockSpec((8, 128), lambda i: (0, 0), pipeline_mode=pl.Buffered(1))
        return True
    except TypeError:
        return False


_HAS_BUFFERED = _supports_pipeline_mode()
_CONST_BUFS = 1 if _HAS_BUFFERED else 2


def _const_spec(block_shape, index_map):
    """BlockSpec for an operand whose block index never changes -> 1 buffer."""
    if _HAS_BUFFERED:
        return pl.BlockSpec(block_shape, index_map, pipeline_mode=pl.Buffered(1))
    return pl.BlockSpec(block_shape, index_map)


def _vmem_capacity_bytes():
    try:
        info = pltpu.get_tpu_info()
        for attr in ("vmem_capacity_bytes", "vmem_size_bytes", "vmem_bytes"):
            v = getattr(info, attr, None)
            if v:
                return int(v)
    except Exception:
        pass
    return 128 * 1024 * 1024   # v5e/v6e default; v7x query succeeds above


def _vmem_limit(need_bytes):
    cap = _vmem_capacity_bytes()
    limit = max(int(need_bytes * 1.25) + (2 << 20), 32 << 20)
    return min(limit, cap - (8 << 20))   # leave headroom for compiler scratch


# --- kernel 1: s1 = x @ W1 (row-parallel, megacore-shardable) ----------------
def proj_kernel(x_ref, w1_ref, s1_ref):
    s1 = jnp.dot(x_ref[...], w1_ref[...], preferred_element_type=jnp.float32)
    s1_ref[...] = s1.astype(s1_ref.dtype)


# --- kernel 2: three adj propagations + log_softmax, adj resident in VMEM ----
def prop_kernel(s1_ref, adj_ref, b1_ref, w2_ref, b2_ref, w3_ref, b3_ref,
                out_ref, s2_scr, s3_scr):
    phase = pl.program_id(0)
    i = pl.program_id(1)
    tm = out_ref.shape[0]
    row0 = pl.multiple_of(i * tm, tm)

    @pl.when(phase == 0)
    def _():
        # h1[i] = relu(adj[i,:] @ s1 + b1) ; s2[i] = h1[i] @ W2
        h1 = jnp.dot(adj_ref[pl.ds(row0, tm), :], s1_ref[...],
                     preferred_element_type=jnp.float32)
        h1 = jnp.maximum(h1 + b1_ref[...], 0.0)
        # F.dropout(p=0.15, training=self.training) is identity at inference.
        # TODO(synk): training-mode dropout (pltpu.prng_random_bits mask + 1/(1-p)) not emitted.
        s2 = jnp.dot(h1.astype(jnp.bfloat16), w2_ref[...],
                     preferred_element_type=jnp.float32)
        s2_scr[pl.ds(row0, tm), :] = s2.astype(s2_scr.dtype)

    @pl.when(phase == 1)
    def _():
        # h2[i] = adj[i,:] @ s2 + b2 ; s3[i] = h2[i] @ W3
        h2 = jnp.dot(adj_ref[pl.ds(row0, tm), :], s2_scr[...],
                     preferred_element_type=jnp.float32)
        h2 = h2 + b2_ref[...]
        s3 = jnp.dot(h2.astype(jnp.bfloat16), w3_ref[...],
                     preferred_element_type=jnp.float32)
        s3_scr[pl.ds(row0, tm), :] = s3.astype(s3_scr.dtype)

    @pl.when(phase == 2)
    def _():
        # h3[i] = adj[i,:] @ s3 + b3 ; out[i] = log_softmax over the 7 classes.
        h3 = jnp.dot(adj_ref[pl.ds(row0, tm), :], s3_scr[...],
                     preferred_element_type=jnp.float32)
        h3 = h3 + b3_ref[...]
        col = jax.lax.broadcasted_iota(jnp.int32, h3.shape, 1)
        valid = col < N_CLASS
        h3 = jnp.where(valid, h3, -jnp.inf)      # keep padded lanes out of max/lse
        m = jnp.max(h3, axis=1, keepdims=True)
        z = h3 - m
        lse = jnp.log(jnp.sum(jnp.exp(z), axis=1, keepdims=True))
        # NOTE: the out block index is pinned to (0,0) during phases 0-1 and
        # only advances during phase 2, so the only blocks ever flushed to HBM
        # are blocks fully written here (revisit semantics documented).
        out_ref[...] = jnp.where(valid, z - lse, 0.0)


def method_gcn_forward(x, adj, params, *, tm=512):
    """x: [N, F_IN] f32, adj: [N, N] f32 -> log-probs [N, N_CLASS] f32."""
    assert tm % 128 == 0, "row tile must be a multiple of 128"
    w1, b1, w2, b2, w3, b3 = params
    n, f_in = x.shape

    n_pad = _round_up(n, tm)
    f_pad = _round_up(f_in, LANE)
    nb = n_pad // tm

    # Zero-pad + cast MXU operands to bf16 (lane-dense, (8,128)-aligned).
    xp = jnp.pad(x.astype(jnp.bfloat16), ((0, n_pad - n), (0, f_pad - f_in)))
    adjp = jnp.pad(adj.astype(jnp.bfloat16), ((0, n_pad - n), (0, n_pad - n)))

    def pad_w(w):
        fi, fo = w.shape
        return jnp.pad(w.astype(jnp.bfloat16),
                       ((0, _round_up(fi, LANE) - fi), (0, HPAD - fo)))

    def pad_b(b):
        return jnp.pad(b.astype(jnp.float32), ((0, 0), (0, HPAD - b.shape[1])))

    w1p, w2p, w3p = pad_w(w1), pad_w(w2), pad_w(w3)
    b1p, b2p, b3p = pad_b(b1), pad_b(b2), pad_b(b3)

    # ---- call 1: s1 = x @ W1, row blocks streamed, W1 single-buffered -------
    proj_vmem = (2 * tm * f_pad * 2                  # x row blocks (bf16, 2 bufs)
                 + _CONST_BUFS * f_pad * HPAD * 2    # W1
                 + 2 * tm * HPAD * 2)                # s1 output blocks (bf16)
    s1 = pl.pallas_call(
        proj_kernel,
        out_shape=jax.ShapeDtypeStruct((n_pad, HPAD), jnp.bfloat16),
        grid_spec=pltpu.PrefetchScalarGridSpec(
            num_scalar_prefetch=0,
            grid=(nb,),
            in_specs=[pl.BlockSpec((tm, f_pad), lambda i: (i, 0)),
                      _const_spec((f_pad, HPAD), lambda i: (0, 0))],
            out_specs=pl.BlockSpec((tm, HPAD), lambda i: (i, 0))),
        compiler_params=pltpu.CompilerParams(
            dimension_semantics=("parallel",),
            vmem_limit_bytes=_vmem_limit(proj_vmem)),
        cost_estimate=pl.CostEstimate(
            flops=2 * n_pad * f_pad * HPAD,
            transcendentals=0,
            bytes_accessed=int(xp.size) * 2 + f_pad * HPAD * 2 + n_pad * HPAD * 2),
    )(xp, w1p)

    # ---- call 2: three adj propagations + log_softmax, adj loaded ONCE ------
    prop_vmem = (_CONST_BUFS * (n_pad * n_pad * 2        # adj resident (bf16)
                                + n_pad * HPAD * 2       # s1 resident (bf16)
                                + 2 * HPAD * HPAD * 2    # W2, W3
                                + 3 * HPAD * 4)          # biases (f32)
                 + 2 * tm * HPAD * 4                     # out blocks (f32)
                 + 2 * n_pad * HPAD * 2)                 # s2/s3 scratch (bf16)
    out_padded = pl.pallas_call(
        prop_kernel,
        out_shape=jax.ShapeDtypeStruct((n_pad, HPAD), jnp.float32),
        grid_spec=pltpu.PrefetchScalarGridSpec(
            num_scalar_prefetch=0,
            grid=(3, nb),
            in_specs=[_const_spec((n_pad, HPAD), lambda p, i: (0, 0)),   # s1
                      _const_spec((n_pad, n_pad), lambda p, i: (0, 0)),  # adj
                      _const_spec((1, HPAD), lambda p, i: (0, 0)),       # b1
                      _const_spec((HPAD, HPAD), lambda p, i: (0, 0)),    # W2
                      _const_spec((1, HPAD), lambda p, i: (0, 0)),       # b2
                      _const_spec((HPAD, HPAD), lambda p, i: (0, 0)),    # W3
                      _const_spec((1, HPAD), lambda p, i: (0, 0))],      # b3
            out_specs=pl.BlockSpec((tm, HPAD),
                                   lambda p, i: (jnp.where(p == 2, i, 0), 0)),
            scratch_shapes=[pltpu.VMEM((n_pad, HPAD), jnp.bfloat16),
                            pltpu.VMEM((n_pad, HPAD), jnp.bfloat16)]),
        compiler_params=pltpu.CompilerParams(
            # Phases depend sequentially on each other through per-core VMEM
            # scratch, and the row axis fills that scratch -> both "arbitrary".
            dimension_semantics=("arbitrary", "arbitrary"),
            vmem_limit_bytes=_vmem_limit(prop_vmem)),
        cost_estimate=pl.CostEstimate(
            flops=2 * n_pad * (3 * n_pad * HPAD + 2 * HPAD * HPAD),
            transcendentals=n_pad * HPAD,
            bytes_accessed=(int(adjp.size) * 2 + n_pad * HPAD * 2
                            + 2 * HPAD * HPAD * 2 + 3 * HPAD * 4
                            + n_pad * HPAD * 4)),
    )(s1, adjp, b1p, w2p, b2p, w3p, b3p)

    return out_padded[:n, :N_CLASS]


def init_params(key):
    """Deterministic init matching GraphConvolution.reset_parameters:
    uniform(-stdv, stdv) with stdv = 1/sqrt(out_features)."""
    ks = jax.random.split(key, 6)

    def layer(kw, kb, fin, fout):
        stdv = 1.0 / math.sqrt(fout)
        w = jax.random.uniform(kw, (fin, fout), jnp.float32, -stdv, stdv)
        b = jax.random.uniform(kb, (1, fout), jnp.float32, -stdv, stdv)
        return w, b

    w1, b1 = layer(ks[0], ks[1], F_IN, H1)
    w2, b2 = layer(ks[2], ks[3], H1, H2)
    w3, b3 = layer(ks[4], ks[5], H2, N_CLASS)
    return (w1, b1, w2, b2, w3, b3)


def _reference_f32(x, adj, params):
    w1, b1, w2, b2, w3, b3 = params
    h = jnp.maximum(adj @ (x @ w1) + b1, 0.0)
    h = adj @ (h @ w2) + b2
    h = adj @ (h @ w3) + b3
    return jax.nn.log_softmax(h, axis=1)


def _reference_bf16(x, adj, params):
    """Reference using the same bf16-input / f32-accumulate arithmetic as the kernel."""
    w1, b1, w2, b2, w3, b3 = params

    def mm(a, b):
        return jnp.dot(a.astype(jnp.bfloat16), b.astype(jnp.bfloat16),
                       preferred_element_type=jnp.float32)

    h = jnp.maximum(mm(adj, mm(x, w1)) + b1, 0.0)
    h = mm(adj, mm(h, w2)) + b2
    h = mm(adj, mm(h, w3)) + b3
    return jax.nn.log_softmax(h, axis=1)


if __name__ == "__main__":
    key = jax.random.PRNGKey(0)
    k_x, k_adj, k_p = jax.random.split(key, 3)

    N = 256  # small synthetic graph -> two row blocks at tm=128

    # Node features (binary bag-of-words, row-normalized).
    x = (jax.random.uniform(k_x, (N, F_IN)) < 0.02).astype(jnp.float32)
    x = x / jnp.maximum(x.sum(axis=1, keepdims=True), 1.0)

    # Symmetric-normalized adjacency with self loops (dense).
    a = (jax.random.uniform(k_adj, (N, N)) < 0.05).astype(jnp.float32)
    a = jnp.maximum(a, a.T)
    a = a + jnp.eye(N, dtype=jnp.float32)
    dinv = 1.0 / jnp.sqrt(a.sum(axis=1))
    adj = a * dinv[:, None] * dinv[None, :]

    params = init_params(k_p)

    out = method_gcn_forward(x, adj, params, tm=128)
    out = jax.block_until_ready(out)
    assert out.shape == (N, N_CLASS)

    ref_bf16 = _reference_bf16(x, adj, params)   # same arithmetic -> tight match
    ref_f32 = _reference_f32(x, adj, params)     # full-f32 -> loose match

    assert jnp.allclose(out, ref_bf16, atol=5e-3, rtol=5e-3), \
        float(jnp.max(jnp.abs(out - ref_bf16)))
    assert jnp.allclose(out, ref_f32, atol=3e-2, rtol=3e-2), \
        float(jnp.max(jnp.abs(out - ref_f32)))

    print("KERNEL_OK")
</pallas_src>

<mosaic_0001>
module attributes {stable_mosaic.version = 11 : i64} {
  func.func @proj_kernel(%arg0: i32, %arg1: memref<128x1536xbf16, #tpu.memory_space<vmem>>, %arg2: memref<1536x128xbf16, #tpu.memory_space<vmem>>, %arg3: memref<128x128xbf16, #tpu.memory_space<vmem>>) attributes {dimension_semantics = [#tpu.dimension_semantics<parallel>], iteration_bounds = array<i64: 2>, scalar_prefetch = 0 : i64, scratch_operands = 0 : i64, tpu.core_type = #tpu.core_type<tc>, window_params = [{transform_indices = @transform_0, window_bounds = array<i64: 128, 1536>}, {pipeline_mode = #tpu.pipeline_mode<synchronous>, transform_indices = @transform_1, window_bounds = array<i64: 1536, 128>}, {transform_indices = @transform_2, window_bounds = array<i64: 128, 128>}]} {
    %c0 = arith.constant 0 : index
    %c0_0 = arith.constant 0 : index
    %0 = vector.load %arg1[%c0, %c0_0] : memref<128x1536xbf16, #tpu.memory_space<vmem>>, vector<128x1536xbf16>
    %c0_1 = arith.constant 0 : index
    %c0_2 = arith.constant 0 : index
    %1 = vector.load %arg2[%c0_1, %c0_2] : memref<1536x128xbf16, #tpu.memory_space<vmem>>, vector<1536x128xbf16>
    %cst = arith.constant dense<0.000000e+00> : vector<128x128xf32>
    %2 = tpu.matmul %0, %1, %cst {dimension_numbers = #tpu.dot_dimension_numbers<[1], [0], [0], [1], [0, 0, 1, 1], [], []>} : vector<128x1536xbf16>, vector<1536x128xbf16>, vector<128x128xf32> -> vector<128x128xf32>
    %3 = arith.truncf %2 : vector<128x128xf32> to vector<128x128xbf16>
    %c0_3 = arith.constant 0 : index
    %c0_4 = arith.constant 0 : index
    %4 = vector.load %arg3[%c0_3, %c0_4] : memref<128x128xbf16, #tpu.memory_space<vmem>>, vector<128x128xbf16>
    tpu.vector_store %arg3[%c0_3, %c0_4], %3 {strides = array<i32>} : memref<128x128xbf16, #tpu.memory_space<vmem>>, vector<128x128xbf16>,
    return
  }
  func.func @transform_0(%arg0: i32) -> (i32, i32) {
    %c0_i32 = arith.constant 0 : i32
    %c0_i32_0 = arith.constant 0 : i32
    return %arg0, %c0_i32 : i32, i32
  }
  func.func @transform_1(%arg0: i32) -> (i32, i32) {
    %c0_i32 = arith.constant 0 : i32
    %c0_i32_0 = arith.constant 0 : i32
    %c0_i32_1 = arith.constant 0 : i32
    return %c0_i32, %c0_i32_0 : i32, i32
  }
  func.func @transform_2(%arg0: i32) -> (i32, i32) {
    %c0_i32 = arith.constant 0 : i32
    %c0_i32_0 = arith.constant 0 : i32
    return %arg0, %c0_i32 : i32, i32
  }
}

</mosaic_0001>

<llo_original>
// kernel: tpu_custom_call.1
$region0: #{tpu_custom_call.1}
  #allocation0 [shape = 'u32[]', space=smem, size = 0x4, offset = 0x4, fixed_abs, tag = 'smem constant byte address 0x4 - core index']
  #allocation1 [shape = 'u32[144,128]{1,0:T(1,128)}', space=vmem, size = 0x12000, scoped, tag = 'internal scratch']
  %s0 = inlined_call_operand.hbm [shape: bf16[256,1536], index: 0, kind: input, shape index: {}]
  %s1 = inlined_call_operand.hbm [shape: bf16[1536,128], index: 1, kind: input, shape index: {}]
  %s2 = inlined_call_operand.hbm [shape: bf16[256,128], index: 2, kind: output, shape index: {}]
  %s3 = sld [smem:[#allocation0]]
  $region49: #{tpu_custom_call.1} parent=0
    _
  %s5 = ssub.s32 1, %s3
  %s6 = scalar_select 0, %s5, %s3
  $region1: #{tpu_custom_call.1} parent=0
    #allocation2 [shape = 'u8[786432]{0}', space=vmem, size = 0xc0000, scoped, tag = 'input window, operand 0']
    #allocation3 [shape = 's32[2]{0}', space=sflag, size = 0x8, scoped, tag = 'scoped memory for tpu_custom_call.1']
    #allocation4 [shape = 's32[2]{0}', space=sflag, size = 0x8, scoped, tag = 'scoped memory for tpu_custom_call.1']
    #allocation5 [shape = 'u8[393216]{0}', space=vmem, size = 0x60000, scoped, tag = 'input window, operand 1, single buffered']
    #allocation6 [shape = 's32[1]{0}', space=sflag, size = 0x4, scoped, tag = 'scoped memory for tpu_custom_call.1']
    #allocation7 [shape = 'u8[65536]{0}', space=vmem, size = 0x10000, scoped, tag = 'output window, operand 0']
    %7 = vsyncpa [#allocation3], 0
    %s8 = scalar_lea.sflag [#allocation3], 1
    %9 = vsyncpa %s8, 0
    %10 = vsyncpa [#allocation6], 0
    %11 = vsyncpa [#allocation4], 0
    %s12 = scalar_lea.sflag [#allocation4], 1
    %13 = vsyncpa %s12, 0
    loop: start=0, step=1, limit=4
    $region2: #{tpu_custom_call.1} parent=1 // loop_pre_header
      _
    $region3: #{tpu_custom_call.1} parent=1 // loop_header
      %s15 = sphi 0, %s19
      %p16 = scmp.ge.s32.totalorder %s15, 4
      %s25 = sphi 0, %s27
      %s28 = sphi 0, %s25
      %s29 = sphi 0, %s28
      %s45 = sphi 0, %s29
      %s49 = sphi 0, %s49
      %s51 = sphi 0, %s49
      %s52 = sphi 0, %s51
      %s66 = sphi 0, %s52
      %s72 = sphi 0, %s74
      %s75 = sphi 0, %s72
      %s76 = sphi 0, %s75
      %s92 = sphi 0, %s76
    $region4: #{tpu_custom_call.1} parent=1 // loop_header_branch
      %18 = sbr.rel (%p16) target = $region8
    $region5: #{tpu_custom_call.1} parent=1 // loop_body
      %s20 = ssub.s32 %s15, 1
      %s21 = ssub.s32 %s15, 2
      %s22 = sadd.s32 %s15, 1
      %s23 = ssub.s32 %s15, %s22
      %p24 = scmp.eq.s32.totalorder %s23, 0
      %s26 = sadd.s32 %s25, 1
      %s27 = scalar_select %p24, %s25, %s26
      %p30 = pneg %p24
      %p31 = scmp.eq.s32.totalorder %s15, 1
      %p32 = por %p30, %p31
      %p33 = scmp.ne.s32.totalorder %s25, %s28
      %p34 = scmp.eq.s32.totalorder %s15, 0
      %p35 = por %p33, %p34
      %p36 = scmp.ne.s32.totalorder %s25, %s28
      %p37 = scmp.eq.s32.totalorder %s20, 1
      %p38 = por %p36, %p37
      %p39 = scmp.ne.s32.totalorder %s28, %s29
      %p40 = scmp.eq.s32.totalorder %s20, 0
      %p41 = por %p39, %p40
      %p42 = scmp.ne.s32.totalorder %s28, %s29
      %p43 = scmp.eq.s32.totalorder %s21, 1
      %p44 = por %p42, %p43
      %p46 = scmp.ne.s32.totalorder %s29, %s45
      %p47 = scmp.eq.s32.totalorder %s21, 0
      %p48 = por %p46, %p47
      %s50 = sadd.s32 %s49, 1
      %p53 = scmp.eq.s32.totalorder %s15, 1
      %p54 = scmp.ne.s32.totalorder %s49, %s51
      %p55 = scmp.eq.s32.totalorder %s15, 0
      %p56 = por %p54, %p55
      %p57 = scmp.ne.s32.totalorder %s49, %s51
      %p58 = scmp.eq.s32.totalorder %s20, 1
      %p59 = por %p57, %p58
      %p60 = scmp.ne.s32.totalorder %s51, %s52
      %p61 = scmp.eq.s32.totalorder %s20, 0
      %p62 = por %p60, %p61
      %p63 = scmp.ne.s32.totalorder %s51, %s52
      %p64 = scmp.eq.s32.totalorder %s21, 1
      %p65 = por %p63, %p64
      %p67 = scmp.ne.s32.totalorder %s52, %s66
      %p68 = scmp.eq.s32.totalorder %s21, 0
      %p69 = por %p67, %p68
      %s70 = ssub.s32 %s15, %s22
      %p71 = scmp.eq.s32.totalorder %s70, 0
      %s73 = sadd.s32 %s72, 1
      %s74 = scalar_select %p71, %s72, %s73
      %p77 = pneg %p71
      %p78 = scmp.eq.s32.totalorder %s15, 1
      %p79 = por %p77, %p78
      %p80 = scmp.ne.s32.totalorder %s72, %s75
      %p81 = scmp.eq.s32.totalorder %s15, 0
      %p82 = por %p80, %p81
      %p83 = scmp.ne.s32.totalorder %s72, %s75
      %p84 = scmp.eq.s32.totalorder %s20, 1
      %p85 = por %p83, %p84
      %p86 = scmp.ne.s32.totalorder %s75, %s76
      %p87 = scmp.eq.s32.totalorder %s20, 0
      %p88 = por %p86, %p87
      %p89 = scmp.ne.s32.totalorder %s75, %s76
      %p90 = scmp.eq.s32.totalorder %s21, 1
      %p91 = por %p89, %p90
      %p93 = scmp.ne.s32.totalorder %s76, %s92
      %p94 = scmp.eq.s32.totalorder %s21, 0
      %p95 = por %p93, %p94
      %p96 = scmp.le.s32.totalorder 1, %s15
      %p97 = scmp.lt.s32.totalorder %s15, 3
      %p98 = pnand %p96, %p97
      %p99 = pneg %p98
      // Predicated region
      $region9: #{tpu_custom_call.1} parent=5 // pred_check
        _
      $region10: #{tpu_custom_call.1} parent=5 // pred_check_branch
        %101 = sbr.rel (%p98) target = $region12
      $region11: #{tpu_custom_call.1} parent=5 // pred_region
        %s102 = ssub.s32 %s15, 1
        // Predicated region
        $region13: #{tpu_custom_call.1} parent=11 // pred_check
          %p103 = pneg %p62
        $region14: #{tpu_custom_call.1} parent=11 // pred_check_branch
          %105 = sbr.rel (%p103) target = $region16
        $region15: #{tpu_custom_call.1} parent=11 // pred_region
          %s107 = ssub.s32 12288, 12288
          %108 = vsyncadd [#allocation6], %s107
          %s109 = sshll.u32 [#allocation5], 4
          %s110 = int_to_ptr.vmem [resolvable:$true] %s109
          %115 = dma.hbm_to_vmem [thread:$0]  %s1, 12288, %s110, [#allocation6], 64, 64, 4
        $region16: #{tpu_custom_call.1} parent=11 // pred_fallthru
          _
      $region12: #{tpu_custom_call.1} parent=5 // pred_fallthru
        _
      %p116 = scmp.lt.s32.totalorder %s15, 2
      // Predicated region
      $region17: #{tpu_custom_call.1} parent=5 // pred_check
        %p117 = pneg %p116
      $region18: #{tpu_custom_call.1} parent=5 // pred_check_branch
        %119 = sbr.rel (%p117) target = $region20
      $region19: #{tpu_custom_call.1} parent=5 // pred_region
        // Predicated region
        $region21: #{tpu_custom_call.1} parent=19 // pred_check
          %p120 = pneg %p35
        $region22: #{tpu_custom_call.1} parent=19 // pred_check_branch
          %122 = sbr.rel (%p120) target = $region24
        $region23: #{tpu_custom_call.1} parent=19 // pred_region
          %s123 = sand.u32 %s25, 1
          %s124 = scalar_lea.sflag [#allocation3], %s123
          %s125 = sand.u32 %s25, 1
          %s126 = smul.addr %s125, 768
          %s127 = scalar_lea.vmem [#allocation2], %s126
          %s128 = smul.u32 16, %s15
          %s130 = ssub.s32 12288, 12288
          %131 = vsyncadd %s124, %s130
          %s132 = smul.addr %s128, 12
          %s133 = smul.addr %s132, 64
          %s134 = scalar_lea.hbm %s0, %s133
          %s135 = sshll.u32 %s127, 4
          %s136 = int_to_ptr.vmem [resolvable:$true] %s135
          %141 = dma.hbm_to_vmem [thread:$0]  %s134, 12288, %s136, %s124, 768, 768, 48
        $region24: #{tpu_custom_call.1} parent=19 // pred_fallthru
          _
      $region20: #{tpu_custom_call.1} parent=5 // pred_fallthru
        _
      %p142 = scmp.le.s32.totalorder 1, %s15
      %p143 = scmp.lt.s32.totalorder %s15, 3
      %p144 = pnand %p142, %p143
      %p145 = pneg %p144
      // Predicated region
      $region25: #{tpu_custom_call.1} parent=5 // pred_check
        _
      $region26: #{tpu_custom_call.1} parent=5 // pred_check_branch
        %147 = sbr.rel (%p144) target = $region28
      $region27: #{tpu_custom_call.1} parent=5 // pred_region
        %s148 = ssub.s32 %s15, 1
        %s149 = sand.u32 %s28, 1
        %s150 = scalar_lea.sflag [#allocation3], %s149
        %s151 = sand.u32 %s28, 1
        %s152 = smul.addr %s151, 768
        %s153 = scalar_lea.vmem [#allocation2], %s152
        // Predicated region
        $region29: #{tpu_custom_call.1} parent=27 // pred_check
          %p154 = pneg %p41
        $region30: #{tpu_custom_call.1} parent=27 // pred_check_branch
          %156 = sbr.rel (%p154) target = $region32
        $region31: #{tpu_custom_call.1} parent=27 // pred_region
          %157 = dma.done %s150, 12288
        $region32: #{tpu_custom_call.1} parent=27 // pred_fallthru
          _
        // Predicated region
        $region33: #{tpu_custom_call.1} parent=27 // pred_check
          %p158 = pneg %p62
        $region34: #{tpu_custom_call.1} parent=27 // pred_check_branch
          %160 = sbr.rel (%p158) target = $region36
        $region35: #{tpu_custom_call.1} parent=27 // pred_region
          %161 = dma.done [#allocation6], 12288
        $region36: #{tpu_custom_call.1} parent=27 // pred_fallthru
          _
        %s162 = sand.u32 %s28, 1
        %s163 = scalar_lea.sflag [#allocation3], %s162
        %s164 = sand.u32 %s28, 1
        %s165 = smul.addr %s164, 768
        %s166 = scalar_lea.vmem [#allocation2], %s165
        %p167 = pneg %p41
        %p168 = pneg %p38
        %p169 = pneg %p62
        %p170 = pneg %p59
        %p171 = pneg %p88
        %p172 = pneg %p85
        %s173 = sand.u32 %s75, 1
        %s174 = scalar_lea.sflag [#allocation4], %s173
        %s175 = sand.u32 %s75, 1
        %s176 = smul.addr %s175, 64
        %s177 = scalar_lea.vmem [#allocation7], %s176
        %s178 = smul.u32 16, %s20
        %s179 = smul.u32 16, %s20
        %v181 = vld [vmem:[%s153] sm:$0xff]
        %v182 = vld [vmem:[%s153 + $0x8] sm:$0xff]
        %v183 = vld [vmem:[%s153 + $0x10] sm:$0xff]
        %v184 = vld [vmem:[%s153 + $0x18] sm:$0xff]
        %v185 = vld [vmem:[%s153 + $0x20] sm:$0xff]
        %v186 = vld [vmem:[%s153 + $0x28] sm:$0xff]
        %v187 = vld [vmem:[%s153 + $0x30] sm:$0xff]
        %v188 = vld [vmem:[%s153 + $0x38] sm:$0xff]
        %v189 = vld [vmem:[%s153 + $0x40] sm:$0xff]
        %v190 = vld [vmem:[%s153 + $0x48] sm:$0xff]
        %v191 = vld [vmem:[%s153 + $0x50] sm:$0xff]
        %v192 = vld [vmem:[%s153 + $0x58] sm:$0xff]
        %v193 = vld [vmem:[%s153 + $0x60] sm:$0xff]
        %v194 = vld [vmem:[%s153 + $0x68] sm:$0xff]
        %v195 = vld [vmem:[%s153 + $0x70] sm:$0xff]
        %v196 = vld [vmem:[%s153 + $0x78] sm:$0xff]
        %v197 = vld [vmem:[%s153 + $0x80] sm:$0xff]
        %v198 = vld [vmem:[%s153 + $0x88] sm:$0xff]
        %v199 = vld [vmem:[%s153 + $0x90] sm:$0xff]
        %v200 = vld [vmem:[%s153 + $0x98] sm:$0xff]
        %v201 = vld [vmem:[%s153 + $0xa0] sm:$0xff]
        %v202 = vld [vmem:[%s153 + $0xa8] sm:$0xff]
        %v203 = vld [vmem:[%s153 + $0xb0] sm:$0xff]
        %v204 = vld [vmem:[%s153 + $0xb8] sm:$0xff]
        %v205 = vld [vmem:[%s153 + $0xc0] sm:$0xff]
        %v206 = vld [vmem:[%s153 + $0xc8] sm:$0xff]
        %v207 = vld [vmem:[%s153 + $0xd0] sm:$0xff]
        %v208 = vld [vmem:[%s153 + $0xd8] sm:$0xff]
        %v209 = vld [vmem:[%s153 + $0xe0] sm:$0xff]
        %v210 = vld [vmem:[%s153 + $0xe8] sm:$0xff]
        %v211 = vld [vmem:[%s153 + $0xf0] sm:$0xff]
        %v212 = vld [vmem:[%s153 + $0xf8] sm:$0xff]
        %v213 = vld [vmem:[%s153 + $0x100] sm:$0xff]
        %v214 = vld [vmem:[%s153 + $0x108] sm:$0xff]
        %v215 = vld [vmem:[%s153 + $0x110] sm:$0xff]
        %v216 = vld [vmem:[%s153 + $0x118] sm:$0xff]
        %v217 = vld [vmem:[%s153 + $0x120] sm:$0xff]
        %v218 = vld [vmem:[%s153 + $0x128] sm:$0xff]
        %v219 = vld [vmem:[%s153 + $0x130] sm:$0xff]
        %v220 = vld [vmem:[%s153 + $0x138] sm:$0xff]
        %v221 = vld [vmem:[%s153 + $0x140] sm:$0xff]
        %v222 = vld [vmem:[%s153 + $0x148] sm:$0xff]
        %v223 = vld [vmem:[%s153 + $0x150] sm:$0xff]
        %v224 = vld [vmem:[%s153 + $0x158] sm:$0xff]
        %v225 = vld [vmem:[%s153 + $0x160] sm:$0xff]
        %v226 = vld [vmem:[%s153 + $0x168] sm:$0xff]
        %v227 = vld [vmem:[%s153 + $0x170] sm:$0xff]
        %v228 = vld [vmem:[%s153 + $0x178] sm:$0xff]
        %v229 = vld [vmem:[%s153 + $0x180] sm:$0xff]
        %v230 = vld [vmem:[%s153 + $0x188] sm:$0xff]
        %v231 = vld [vmem:[%s153 + $0x190] sm:$0xff]
        %v232 = vld [vmem:[%s153 + $0x198] sm:$0xff]
        %v233 = vld [vmem:[%s153 + $0x1a0] sm:$0xff]
        %v234 = vld [vmem:[%s153 + $0x1a8] sm:$0xff]
        %v235 = vld [vmem:[%s153 + $0x1b0] sm:$0xff]
        %v236 = vld [vmem:[%s153 + $0x1b8] sm:$0xff]
        %v237 = vld [vmem:[%s153 + $0x1c0] sm:$0xff]
        %v238 = vld [vmem:[%s153 + $0x1c8] sm:$0xff]
        %v239 = vld [vmem:[%s153 + $0x1d0] sm:$0xff]
        %v240 = vld [vmem:[%s153 + $0x1d8] sm:$0xff]
        %v241 = vld [vmem:[%s153 + $0x1e0] sm:$0xff]
        %v242 = vld [vmem:[%s153 + $0x1e8] sm:$0xff]
        %v243 = vld [vmem:[%s153 + $0x1f0] sm:$0xff]
        %v244 = vld [vmem:[%s153 + $0x1f8] sm:$0xff]
        %v245 = vld [vmem:[%s153 + $0x200] sm:$0xff]
        %v246 = vld [vmem:[%s153 + $0x208] sm:$0xff]
        %v247 = vld [vmem:[%s153 + $0x210] sm:$0xff]
        %v248 = vld [vmem:[%s153 + $0x218] sm:$0xff]
        %v249 = vld [vmem:[%s153 + $0x220] sm:$0xff]
        %v250 = vld [vmem:[%s153 + $0x228] sm:$0xff]
        %v251 = vld [vmem:[%s153 + $0x230] sm:$0xff]
        %v252 = vld [vmem:[%s153 + $0x238] sm:$0xff]
        %v253 = vld [vmem:[%s153 + $0x240] sm:$0xff]
        %v254 = vld [vmem:[%s153 + $0x248] sm:$0xff]
        %v255 = vld [vmem:[%s153 + $0x250] sm:$0xff]
        %v256 = vld [vmem:[%s153 + $0x258] sm:$0xff]
        %v257 = vld [vmem:[%s153 + $0x260] sm:$0xff]
        %v258 = vld [vmem:[%s153 + $0x268] sm:$0xff]
        %v259 = vld [vmem:[%s153 + $0x270] sm:$0xff]
        %v260 = vld [vmem:[%s153 + $0x278] sm:$0xff]
        %v261 = vld [vmem:[%s153 + $0x280] sm:$0xff]
        %v262 = vld [vmem:[%s153 + $0x288] sm:$0xff]
        %v263 = vld [vmem:[%s153 + $0x290] sm:$0xff]
        %v264 = vld [vmem:[%s153 + $0x298] sm:$0xff]
        %v265 = vld [vmem:[%s153 + $0x2a0] sm:$0xff]
        %v266 = vld [vmem:[%s153 + $0x2a8] sm:$0xff]
        %v267 = vld [vmem:[%s153 + $0x2b0] sm:$0xff]
        %v268 = vld [vmem:[%s153 + $0x2b8] sm:$0xff]
        %v269 = vld [vmem:[%s153 + $0x2c0] sm:$0xff]
        %v270 = vld [vmem:[%s153 + $0x2c8] sm:$0xff]
        %v271 = vld [vmem:[%s153 + $0x2d0] sm:$0xff]
        %v272 = vld [vmem:[%s153 + $0x2d8] sm:$0xff]
        %v273 = vld [vmem:[%s153 + $0x2e0] sm:$0xff]
        %v274 = vld [vmem:[%s153 + $0x2e8] sm:$0xff]
        %v275 = vld [vmem:[%s153 + $0x2f0] sm:$0xff]
        %v276 = vld [vmem:[%s153 + $0x2f8] sm:$0xff]
        %v277 = vld [vmem:[#allocation5] sm:$0xf]
        %v278 = vld [vmem:[#allocation5 + $0x4] sm:$0xf]
        %v279 = vld [vmem:[#allocation5 + $0x8] sm:$0xf]
        %v280 = vld [vmem:[#allocation5 + $0xc] sm:$0xf]
        %v281 = vld [vmem:[#allocation5 + $0x10] sm:$0xf]
        %v282 = vld [vmem:[#allocation5 + $0x14] sm:$0xf]
        %v283 = vld [vmem:[#allocation5 + $0x18] sm:$0xf]
        %v284 = vld [vmem:[#allocation5 + $0x1c] sm:$0xf]
        %v285 = vld [vmem:[#allocation5 + $0x20] sm:$0xf]
        %v286 = vld [vmem:[#allocation5 + $0x24] sm:$0xf]
        %v287 = vld [vmem:[#allocation5 + $0x28] sm:$0xf]
        %v288 = vld [vmem:[#allocation5 + $0x2c] sm:$0xf]
        %v289 = vld [vmem:[#allocation5 + $0x30] sm:$0xf]
        %v290 = vld [vmem:[#allocation5 + $0x34] sm:$0xf]
        %v291 = vld [vmem:[#allocation5 + $0x38] sm:$0xf]
        %v292 = vld [vmem:[#allocation5 + $0x3c] sm:$0xf]
        %v293 = vld [vmem:[#allocation5 + $0x40] sm:$0xf]
        %v294 = vld [vmem:[#allocation5 + $0x44] sm:$0xf]
        %v295 = vld [vmem:[#allocation5 + $0x48] sm:$0xf]
        %v296 = vld [vmem:[#allocation5 + $0x4c] sm:$0xf]
        %v297 = vld [vmem:[#allocation5 + $0x50] sm:$0xf]
        %v298 = vld [vmem:[#allocation5 + $0x54] sm:$0xf]
        %v299 = vld [vmem:[#allocation5 + $0x58] sm:$0xf]
        %v300 = vld [vmem:[#allocation5 + $0x5c] sm:$0xf]
        %v301 = vld [vmem:[#allocation5 + $0x60] sm:$0xf]
        %v302 = vld [vmem:[#allocation5 + $0x64] sm:$0xf]
        %v303 = vld [vmem:[#allocation5 + $0x68] sm:$0xf]
        %v304 = vld [vmem:[#allocation5 + $0x6c] sm:$0xf]
        %v305 = vld [vmem:[#allocation5 + $0x70] sm:$0xf]
        %v306 = vld [vmem:[#allocation5 + $0x74] sm:$0xf]
        %v307 = vld [vmem:[#allocation5 + $0x78] sm:$0xf]
        %v308 = vld [vmem:[#allocation5 + $0x7c] sm:$0xf]
        %v309 = vld [vmem:[#allocation5 + $0x80] sm:$0xf]
        %v310 = vld [vmem:[#allocation5 + $0x84] sm:$0xf]
        %v311 = vld [vmem:[#allocation5 + $0x88] sm:$0xf]
        %v312 = vld [vmem:[#allocation5 + $0x8c] sm:$0xf]
        %v313 = vld [vmem:[#allocation5 + $0x90] sm:$0xf]
        %v314 = vld [vmem:[#allocation5 + $0x94] sm:$0xf]
        %v315 = vld [vmem:[#allocation5 + $0x98] sm:$0xf]
        %v316 = vld [vmem:[#allocation5 + $0x9c] sm:$0xf]
        %v317 = vld [vmem:[#allocation5 + $0xa0] sm:$0xf]
        %v318 = vld [vmem:[#allocation5 + $0xa4] sm:$0xf]
        %v319 = vld [vmem:[#allocation5 + $0xa8] sm:$0xf]
        %v320 = vld [vmem:[#allocation5 + $0xac] sm:$0xf]
        %v321 = vld [vmem:[#allocation5 + $0xb0] sm:$0xf]
        %v322 = vld [vmem:[#allocation5 + $0xb4] sm:$0xf]
        %v323 = vld [vmem:[#allocation5 + $0xb8] sm:$0xf]
        %v324 = vld [vmem:[#allocation5 + $0xbc] sm:$0xf]
        %v325 = vld [vmem:[#allocation5 + $0xc0] sm:$0xf]
        %v326 = vld [vmem:[#allocation5 + $0xc4] sm:$0xf]
        %v327 = vld [vmem:[#allocation5 + $0xc8] sm:$0xf]
        %v328 = vld [vmem:[#allocation5 + $0xcc] sm:$0xf]
        %v329 = vld [vmem:[#allocation5 + $0xd0] sm:$0xf]
        %v330 = vld [vmem:[#allocation5 + $0xd4] sm:$0xf]
        %v331 = vld [vmem:[#allocation5 + $0xd8] sm:$0xf]
        %v332 = vld [vmem:[#allocation5 + $0xdc] sm:$0xf]
        %v333 = vld [vmem:[#allocation5 + $0xe0] sm:$0xf]
        %v334 = vld [vmem:[#allocation5 + $0xe4] sm:$0xf]
        %v335 = vld [vmem:[#allocation5 + $0xe8] sm:$0xf]
        %v336 = vld [vmem:[#allocation5 + $0xec] sm:$0xf]
        %v337 = vld [vmem:[#allocation5 + $0xf0] sm:$0xf]
        %v338 = vld [vmem:[#allocation5 + $0xf4] sm:$0xf]
        %v339 = vld [vmem:[#allocation5 + $0xf8] sm:$0xf]
        %v340 = vld [vmem:[#allocation5 + $0xfc] sm:$0xf]
        %v341 = vld [vmem:[#allocation5 + $0x100] sm:$0xf]
        %v342 = vld [vmem:[#allocation5 + $0x104] sm:$0xf]
        %v343 = vld [vmem:[#allocation5 + $0x108] sm:$0xf]
        %v344 = vld [vmem:[#allocation5 + $0x10c] sm:$0xf]
        %v345 = vld [vmem:[#allocation5 + $0x110] sm:$0xf]
        %v346 = vld [vmem:[#allocation5 + $0x114] sm:$0xf]
        %v347 = vld [vmem:[#allocation5 + $0x118] sm:$0xf]
        %v348 = vld [vmem:[#allocation5 + $0x11c] sm:$0xf]
        %v349 = vld [vmem:[#allocation5 + $0x120] sm:$0xf]
        %v350 = vld [vmem:[#allocation5 + $0x124] sm:$0xf]
        %v351 = vld [vmem:[#allocation5 + $0x128] sm:$0xf]
        %v352 = vld [vmem:[#allocation5 + $0x12c] sm:$0xf]
        %v353 = vld [vmem:[#allocation5 + $0x130] sm:$0xf]
        %v354 = vld [vmem:[#allocation5 + $0x134] sm:$0xf]
        %v355 = vld [vmem:[#allocation5 + $0x138] sm:$0xf]
        %v356 = vld [vmem:[#allocation5 + $0x13c] sm:$0xf]
        %v357 = vld [vmem:[#allocation5 + $0x140] sm:$0xf]
        %v358 = vld [vmem:[#allocation5 + $0x144] sm:$0xf]
        %v359 = vld [vmem:[#allocation5 + $0x148] sm:$0xf]
        %v360 = vld [vmem:[#allocation5 + $0x14c] sm:$0xf]
        %v361 = vld [vmem:[#allocation5 + $0x150] sm:$0xf]
        %v362 = vld [vmem:[#allocation5 + $0x154] sm:$0xf]
        %v363 = vld [vmem:[#allocation5 + $0x158] sm:$0xf]
        %v364 = vld [vmem:[#allocation5 + $0x15c] sm:$0xf]
        %v365 = vld [vmem:[#allocation5 + $0x160] sm:$0xf]
        %v366 = vld [vmem:[#allocation5 + $0x164] sm:$0xf]
        %v367 = vld [vmem:[#allocation5 + $0x168] sm:$0xf]
        %v368 = vld [vmem:[#allocation5 + $0x16c] sm:$0xf]
        %v369 = vld [vmem:[#allocation5 + $0x170] sm:$0xf]
        %v370 = vld [vmem:[#allocation5 + $0x174] sm:$0xf]
        %v371 = vld [vmem:[#allocation5 + $0x178] sm:$0xf]
        %v372 = vld [vmem:[#allocation5 + $0x17c] sm:$0xf]
        %v373 = vld [vmem:[#allocation5 + $0x180] sm:$0xf]
        %v374 = vld [vmem:[#allocation5 + $0x184] sm:$0xf]
        %v375 = vld [vmem:[#allocation5 + $0x188] sm:$0xf]
        %v376 = vld [vmem:[#allocation5 + $0x18c] sm:$0xf]
        %v377 = vld [vmem:[#allocation5 + $0x190] sm:$0xf]
        %v378 = vld [vmem:[#allocation5 + $0x194] sm:$0xf]
        %v379 = vld [vmem:[#allocation5 + $0x198] sm:$0xf]
        %v380 = vld [vmem:[#allocation5 + $0x19c] sm:$0xf]
        %v381 = vld [vmem:[#allocation5 + $0x1a0] sm:$0xf]
        %v382 = vld [vmem:[#allocation5 + $0x1a4] sm:$0xf]
        %v383 = vld [vmem:[#allocation5 + $0x1a8] sm:$0xf]
        %v384 = vld [vmem:[#allocation5 + $0x1ac] sm:$0xf]
        %v385 = vld [vmem:[#allocation5 + $0x1b0] sm:$0xf]
        %v386 = vld [vmem:[#allocation5 + $0x1b4] sm:$0xf]
        %v387 = vld [vmem:[#allocation5 + $0x1b8] sm:$0xf]
        %v388 = vld [vmem:[#allocation5 + $0x1bc] sm:$0xf]
        %v389 = vld [vmem:[#allocation5 + $0x1c0] sm:$0xf]
        %v390 = vld [vmem:[#allocation5 + $0x1c4] sm:$0xf]
        %v391 = vld [vmem:[#allocation5 + $0x1c8] sm:$0xf]
        %v392 = vld [vmem:[#allocation5 + $0x1cc] sm:$0xf]
        %v393 = vld [vmem:[#allocation5 + $0x1d0] sm:$0xf]
        %v394 = vld [vmem:[#allocation5 + $0x1d4] sm:$0xf]
        %v395 = vld [vmem:[#allocation5 + $0x1d8] sm:$0xf]
        %v396 = vld [vmem:[#allocation5 + $0x1dc] sm:$0xf]
        %v397 = vld [vmem:[#allocation5 + $0x1e0] sm:$0xf]
        %v398 = vld [vmem:[#allocation5 + $0x1e4] sm:$0xf]
        %v399 = vld [vmem:[#allocation5 + $0x1e8] sm:$0xf]
        %v400 = vld [vmem:[#allocation5 + $0x1ec] sm:$0xf]
        %v401 = vld [vmem:[#allocation5 + $0x1f0] sm:$0xf]
        %v402 = vld [vmem:[#allocation5 + $0x1f4] sm:$0xf]
        %v403 = vld [vmem:[#allocation5 + $0x1f8] sm:$0xf]
        %v404 = vld [vmem:[#allocation5 + $0x1fc] sm:$0xf]
        %v405 = vld [vmem:[#allocation5 + $0x200] sm:$0xf]
        %v406 = vld [vmem:[#allocation5 + $0x204] sm:$0xf]
        %v407 = vld [vmem:[#allocation5 + $0x208] sm:$0xf]
        %v408 = vld [vmem:[#allocation5 + $0x20c] sm:$0xf]
        %v409 = vld [vmem:[#allocation5 + $0x210] sm:$0xf]
        %v410 = vld [vmem:[#allocation5 + $0x214] sm:$0xf]
        %v411 = vld [vmem:[#allocation5 + $0x218] sm:$0xf]
        %v412 = vld [vmem:[#allocation5 + $0x21c] sm:$0xf]
        %v413 = vld [vmem:[#allocation5 + $0x220] sm:$0xf]
        %v414 = vld [vmem:[#allocation5 + $0x224] sm:$0xf]
        %v415 = vld [vmem:[#allocation5 + $0x228] sm:$0xf]
        %v416 = vld [vmem:[#allocation5 + $0x22c] sm:$0xf]
        %v417 = vld [vmem:[#allocation5 + $0x230] sm:$0xf]
        %v418 = vld [vmem:[#allocation5 + $0x234] sm:$0xf]
        %v419 = vld [vmem:[#allocation5 + $0x238] sm:$0xf]
        %v420 = vld [vmem:[#allocation5 + $0x23c] sm:$0xf]
        %v421 = vld [vmem:[#allocation5 + $0x240] sm:$0xf]
        %v422 = vld [vmem:[#allocation5 + $0x244] sm:$0xf]
        %v423 = vld [vmem:[#allocation5 + $0x248] sm:$0xf]
        %v424 = vld [vmem:[#allocation5 + $0x24c] sm:$0xf]
        %v425 = vld [vmem:[#allocation5 + $0x250] sm:$0xf]
        %v426 = vld [vmem:[#allocation5 + $0x254] sm:$0xf]
        %v427 = vld [vmem:[#allocation5 + $0x258] sm:$0xf]
        %v428 = vld [vmem:[#allocation5 + $0x25c] sm:$0xf]
        %v429 = vld [vmem:[#allocation5 + $0x260] sm:$0xf]
        %v430 = vld [vmem:[#allocation5 + $0x264] sm:$0xf]
        %v431 = vld [vmem:[#allocation5 + $0x268] sm:$0xf]
        %v432 = vld [vmem:[#allocation5 + $0x26c] sm:$0xf]
        %v433 = vld [vmem:[#allocation5 + $0x270] sm:$0xf]
        %v434 = vld [vmem:[#allocation5 + $0x274] sm:$0xf]
        %v435 = vld [vmem:[#allocation5 + $0x278] sm:$0xf]
        %v436 = vld [vmem:[#allocation5 + $0x27c] sm:$0xf]
        %v437 = vld [vmem:[#allocation5 + $0x280] sm:$0xf]
        %v438 = vld [vmem:[#allocation5 + $0x284] sm:$0xf]
        %v439 = vld [vmem:[#allocation5 + $0x288] sm:$0xf]
        %v440 = vld [vmem:[#allocation5 + $0x28c] sm:$0xf]
        %v441 = vld [vmem:[#allocation5 + $0x290] sm:$0xf]
        %v442 = vld [vmem:[#allocation5 + $0x294] sm:$0xf]
        %v443 = vld [vmem:[#allocation5 + $0x298] sm:$0xf]
        %v444 = vld [vmem:[#allocation5 + $0x29c] sm:$0xf]
        %v445 = vld [vmem:[#allocation5 + $0x2a0] sm:$0xf]
        %v446 = vld [vmem:[#allocation5 + $0x2a4] sm:$0xf]
        %v447 = vld [vmem:[#allocation5 + $0x2a8] sm:$0xf]
        %v448 = vld [vmem:[#allocation5 + $0x2ac] sm:$0xf]
        %v449 = vld [vmem:[#allocation5 + $0x2b0] sm:$0xf]
        %v450 = vld [vmem:[#allocation5 + $0x2b4] sm:$0xf]
        %v451 = vld [vmem:[#allocation5 + $0x2b8] sm:$0xf]
        %v452 = vld [vmem:[#allocation5 + $0x2bc] sm:$0xf]
        %v453 = vld [vmem:[#allocation5 + $0x2c0] sm:$0xf]
        %v454 = vld [vmem:[#allocation5 + $0x2c4] sm:$0xf]
        %v455 = vld [vmem:[#allocation5 + $0x2c8] sm:$0xf]
        %v456 = vld [vmem:[#allocation5 + $0x2cc] sm:$0xf]
        %v457 = vld [vmem:[#allocation5 + $0x2d0] sm:$0xf]
        %v458 = vld [vmem:[#allocation5 + $0x2d4] sm:$0xf]
        %v459 = vld [vmem:[#allocation5 + $0x2d8] sm:$0xf]
        %v460 = vld [vmem:[#allocation5 + $0x2dc] sm:$0xf]
        %v461 = vld [vmem:[#allocation5 + $0x2e0] sm:$0xf]
        %v462 = vld [vmem:[#allocation5 + $0x2e4] sm:$0xf]
        %v463 = vld [vmem:[#allocation5 + $0x2e8] sm:$0xf]
        %v464 = vld [vmem:[#allocation5 + $0x2ec] sm:$0xf]
        %v465 = vld [vmem:[#allocation5 + $0x2f0] sm:$0xf]
        %v466 = vld [vmem:[#allocation5 + $0x2f4] sm:$0xf]
        %v467 = vld [vmem:[#allocation5 + $0x2f8] sm:$0xf]
        %v468 = vld [vmem:[#allocation5 + $0x2fc] sm:$0xf]
        %v565 = vunpack.c.l.b16 %v181
        %v566 = vunpack.c.h.b16 %v181
        %v567 = vunpack.c.l.b16 %v182
        %v568 = vunpack.c.h.b16 %v182
        %v569 = vunpack.c.l.b16 %v183
        %v570 = vunpack.c.h.b16 %v183
        %v571 = vunpack.c.l.b16 %v184
        %v572 = vunpack.c.h.b16 %v184
        %v573 = vunpack.c.l.b16 %v185
        %v574 = vunpack.c.h.b16 %v185
        %v575 = vunpack.c.l.b16 %v186
        %v576 = vunpack.c.h.b16 %v186
        %v577 = vunpack.c.l.b16 %v187
        %v578 = vunpack.c.h.b16 %v187
        %v579 = vunpack.c.l.b16 %v188
        %v580 = vunpack.c.h.b16 %v188
        %v581 = vunpack.c.l.b16 %v189
        %v582 = vunpack.c.h.b16 %v189
        %v583 = vunpack.c.l.b16 %v190
        %v584 = vunpack.c.h.b16 %v190
        %v585 = vunpack.c.l.b16 %v191
        %v586 = vunpack.c.h.b16 %v191
        %v587 = vunpack.c.l.b16 %v192
        %v588 = vunpack.c.h.b16 %v192
        %v589 = vunpack.c.l.b16 %v193
        %v590 = vunpack.c.h.b16 %v193
        %v591 = vunpack.c.l.b16 %v194
        %v592 = vunpack.c.h.b16 %v194
        %v593 = vunpack.c.l.b16 %v195
        %v594 = vunpack.c.h.b16 %v195
        %v595 = vunpack.c.l.b16 %v196
        %v596 = vunpack.c.h.b16 %v196
        %v597 = vunpack.c.l.b16 %v197
        %v598 = vunpack.c.h.b16 %v197
        %v599 = vunpack.c.l.b16 %v198
        %v600 = vunpack.c.h.b16 %v198
        %v601 = vunpack.c.l.b16 %v199
        %v602 = vunpack.c.h.b16 %v199
        %v603 = vunpack.c.l.b16 %v200
        %v604 = vunpack.c.h.b16 %v200
        %v605 = vunpack.c.l.b16 %v201
        %v606 = vunpack.c.h.b16 %v201
        %v607 = vunpack.c.l.b16 %v202
        %v608 = vunpack.c.h.b16 %v202
        %v609 = vunpack.c.l.b16 %v203
        %v610 = vunpack.c.h.b16 %v203
        %v611 = vunpack.c.l.b16 %v204
        %v612 = vunpack.c.h.b16 %v204
        %v613 = vunpack.c.l.b16 %v205
        %v614 = vunpack.c.h.b16 %v205
        %v615 = vunpack.c.l.b16 %v206
        %v616 = vunpack.c.h.b16 %v206
        %v617 = vunpack.c.l.b16 %v207
        %v618 = vunpack.c.h.b16 %v207
        %v619 = vunpack.c.l.b16 %v208
        %v620 = vunpack.c.h.b16 %v208
        %v621 = vunpack.c.l.b16 %v209
        %v622 = vunpack.c.h.b16 %v209
        %v623 = vunpack.c.l.b16 %v210
        %v624 = vunpack.c.h.b16 %v210
        %v625 = vunpack.c.l.b16 %v211
        %v626 = vunpack.c.h.b16 %v211
        %v627 = vunpack.c.l.b16 %v212
        %v628 = vunpack.c.h.b16 %v212
        %v629 = vunpack.c.l.b16 %v213
        %v630 = vunpack.c.h.b16 %v213
        %v631 = vunpack.c.l.b16 %v214
        %v632 = vunpack.c.h.b16 %v214
        %v633 = vunpack.c.l.b16 %v215
        %v634 = vunpack.c.h.b16 %v215
        %v635 = vunpack.c.l.b16 %v216
        %v636 = vunpack.c.h.b16 %v216
        %v637 = vunpack.c.l.b16 %v217
        %v638 = vunpack.c.h.b16 %v217
        %v639 = vunpack.c.l.b16 %v218
        %v640 = vunpack.c.h.b16 %v218
        %v641 = vunpack.c.l.b16 %v219
        %v642 = vunpack.c.h.b16 %v219
        %v643 = vunpack.c.l.b16 %v220
        %v644 = vunpack.c.h.b16 %v220
        %v645 = vunpack.c.l.b16 %v221
        %v646 = vunpack.c.h.b16 %v221
        %v647 = vunpack.c.l.b16 %v222
        %v648 = vunpack.c.h.b16 %v222
        %v649 = vunpack.c.l.b16 %v223
        %v650 = vunpack.c.h.b16 %v223
        %v651 = vunpack.c.l.b16 %v224
        %v652 = vunpack.c.h.b16 %v224
        %v653 = vunpack.c.l.b16 %v225
        %v654 = vunpack.c.h.b16 %v225
        %v655 = vunpack.c.l.b16 %v226
        %v656 = vunpack.c.h.b16 %v226
        %v657 = vunpack.c.l.b16 %v227
        %v658 = vunpack.c.h.b16 %v227
        %v659 = vunpack.c.l.b16 %v228
        %v660 = vunpack.c.h.b16 %v228
        %v661 = vunpack.c.l.b16 %v229
        %v662 = vunpack.c.h.b16 %v229
        %v663 = vunpack.c.l.b16 %v230
        %v664 = vunpack.c.h.b16 %v230
        %v665 = vunpack.c.l.b16 %v231
        %v666 = vunpack.c.h.b16 %v231
        %v667 = vunpack.c.l.b16 %v232
        %v668 = vunpack.c.h.b16 %v232
        %v669 = vunpack.c.l.b16 %v233
        %v670 = vunpack.c.h.b16 %v233
        %v671 = vunpack.c.l.b16 %v234
        %v672 = vunpack.c.h.b16 %v234
        %v673 = vunpack.c.l.b16 %v235
        %v674 = vunpack.c.h.b16 %v235
        %v675 = vunpack.c.l.b16 %v236
        %v676 = vunpack.c.h.b16 %v236
        %v677 = vunpack.c.l.b16 %v237
        %v678 = vunpack.c.h.b16 %v237
        %v679 = vunpack.c.l.b16 %v238
        %v680 = vunpack.c.h.b16 %v238
        %v681 = vunpack.c.l.b16 %v239
        %v682 = vunpack.c.h.b16 %v239
        %v683 = vunpack.c.l.b16 %v240
        %v684 = vunpack.c.h.b16 %v240
        %v685 = vunpack.c.l.b16 %v241
        %v686 = vunpack.c.h.b16 %v241
        %v687 = vunpack.c.l.b16 %v242
        %v688 = vunpack.c.h.b16 %v242
        %v689 = vunpack.c.l.b16 %v243
        %v690 = vunpack.c.h.b16 %v243
        %v691 = vunpack.c.l.b16 %v244
        %v692 = vunpack.c.h.b16 %v244
        %v693 = vunpack.c.l.b16 %v245
        %v694 = vunpack.c.h.b16 %v245
        %v695 = vunpack.c.l.b16 %v246
        %v696 = vunpack.c.h.b16 %v246
        %v697 = vunpack.c.l.b16 %v247
        %v698 = vunpack.c.h.b16 %v247
        %v699 = vunpack.c.l.b16 %v248
        %v700 = vunpack.c.h.b16 %v248
        %v701 = vunpack.c.l.b16 %v249
        %v702 = vunpack.c.h.b16 %v249
        %v703 = vunpack.c.l.b16 %v250
        %v704 = vunpack.c.h.b16 %v250
        %v705 = vunpack.c.l.b16 %v251
        %v706 = vunpack.c.h.b16 %v251
        %v707 = vunpack.c.l.b16 %v252
        %v708 = vunpack.c.h.b16 %v252
        %v709 = vunpack.c.l.b16 %v253
        %v710 = vunpack.c.h.b16 %v253
        %v711 = vunpack.c.l.b16 %v254
        %v712 = vunpack.c.h.b16 %v254
        %v713 = vunpack.c.l.b16 %v255
        %v714 = vunpack.c.h.b16 %v255
        %v715 = vunpack.c.l.b16 %v256
        %v716 = vunpack.c.h.b16 %v256
        %v717 = vunpack.c.l.b16 %v257
        %v718 = vunpack.c.h.b16 %v257
        %v719 = vunpack.c.l.b16 %v258
        %v720 = vunpack.c.h.b16 %v258
        %v721 = vunpack.c.l.b16 %v259
        %v722 = vunpack.c.h.b16 %v259
        %v723 = vunpack.c.l.b16 %v260
        %v724 = vunpack.c.h.b16 %v260
        %v725 = vunpack.c.l.b16 %v261
        %v726 = vunpack.c.h.b16 %v261
        %v727 = vunpack.c.l.b16 %v262
        %v728 = vunpack.c.h.b16 %v262
        %v729 = vunpack.c.l.b16 %v263
        %v730 = vunpack.c.h.b16 %v263
        %v731 = vunpack.c.l.b16 %v264
        %v732 = vunpack.c.h.b16 %v264
        %v733 = vunpack.c.l.b16 %v265
        %v734 = vunpack.c.h.b16 %v265
        %v735 = vunpack.c.l.b16 %v266
        %v736 = vunpack.c.h.b16 %v266
        %v737 = vunpack.c.l.b16 %v267
        %v738 = vunpack.c.h.b16 %v267
        %v739 = vunpack.c.l.b16 %v268
        %v740 = vunpack.c.h.b16 %v268
        %v741 = vunpack.c.l.b16 %v269
        %v742 = vunpack.c.h.b16 %v269
        %v743 = vunpack.c.l.b16 %v270
        %v744 = vunpack.c.h.b16 %v270
        %v745 = vunpack.c.l.b16 %v271
        %v746 = vunpack.c.h.b16 %v271
        %v747 = vunpack.c.l.b16 %v272
        %v748 = vunpack.c.h.b16 %v272
        %v749 = vunpack.c.l.b16 %v273
        %v750 = vunpack.c.h.b16 %v273
        %v751 = vunpack.c.l.b16 %v274
        %v752 = vunpack.c.h.b16 %v274
        %v753 = vunpack.c.l.b16 %v275
        %v754 = vunpack.c.h.b16 %v275
        %v755 = vunpack.c.l.b16 %v276
        %v756 = vunpack.c.h.b16 %v276
        %v757 = vpack.c.b16 %v577, %v565
        %v758 = vpack.c.b16 %v578, %v566
        %v759 = vpack.c.b16 %v579, %v567
        %v760 = vpack.c.b16 %v580, %v568
        %v761 = vpack.c.b16 %v581, %v569
        %v762 = vpack.c.b16 %v582, %v570
        %v763 = vpack.c.b16 %v583, %v571
        %v764 = vpack.c.b16 %v584, %v572
        %v765 = vpack.c.b16 %v585, %v573
        %v766 = vpack.c.b16 %v586, %v574
        %v767 = vpack.c.b16 %v587, %v575
        %v768 = vpack.c.b16 %v588, %v576
        %v769 = vpack.c.b16 %v601, %v589
        %v770 = vpack.c.b16 %v602, %v590
        %v771 = vpack.c.b16 %v603, %v591
        %v772 = vpack.c.b16 %v604, %v592
        %v773 = vpack.c.b16 %v605, %v593
        %v774 = vpack.c.b16 %v606, %v594
        %v775 = vpack.c.b16 %v607, %v595
        %v776 = vpack.c.b16 %v608, %v596
        %v777 = vpack.c.b16 %v609, %v597
        %v778 = vpack.c.b16 %v610, %v598
        %v779 = vpack.c.b16 %v611, %v599
        %v780 = vpack.c.b16 %v612, %v600
        %v781 = vpack.c.b16 %v625, %v613
        %v782 = vpack.c.b16 %v626, %v614
        %v783 = vpack.c.b16 %v627, %v615
        %v784 = vpack.c.b16 %v628, %v616
        %v785 = vpack.c.b16 %v629, %v617
        %v786 = vpack.c.b16 %v630, %v618
        %v787 = vpack.c.b16 %v631, %v619
        %v788 = vpack.c.b16 %v632, %v620
        %v789 = vpack.c.b16 %v633, %v621
        %v790 = vpack.c.b16 %v634, %v622
        %v791 = vpack.c.b16 %v635, %v623
        %v792 = vpack.c.b16 %v636, %v624
        %v793 = vpack.c.b16 %v649, %v637
        %v794 = vpack.c.b16 %v650, %v638
        %v795 = vpack.c.b16 %v651, %v639
        %v796 = vpack.c.b16 %v652, %v640
        %v797 = vpack.c.b16 %v653, %v641
        %v798 = vpack.c.b16 %v654, %v642
        %v799 = vpack.c.b16 %v655, %v643
        %v800 = vpack.c.b16 %v656, %v644
        %v801 = vpack.c.b16 %v657, %v645
        %v802 = vpack.c.b16 %v658, %v646
        %v803 = vpack.c.b16 %v659, %v647
        %v804 = vpack.c.b16 %v660, %v648
        %v805 = vpack.c.b16 %v673, %v661
        %v806 = vpack.c.b16 %v674, %v662
        %v807 = vpack.c.b16 %v675, %v663
        %v808 = vpack.c.b16 %v676, %v664
        %v809 = vpack.c.b16 %v677, %v665
        %v810 = vpack.c.b16 %v678, %v666
        %v811 = vpack.c.b16 %v679, %v667
        %v812 = vpack.c.b16 %v680, %v668
        %v813 = vpack.c.b16 %v681, %v669
        %v814 = vpack.c.b16 %v682, %v670
        %v815 = vpack.c.b16 %v683, %v671
        %v816 = vpack.c.b16 %v684, %v672
        %v817 = vpack.c.b16 %v697, %v685
        %v818 = vpack.c.b16 %v698, %v686
        %v819 = vpack.c.b16 %v699, %v687
        %v820 = vpack.c.b16 %v700, %v688
        %v821 = vpack.c.b16 %v701, %v689
        %v822 = vpack.c.b16 %v702, %v690
        %v823 = vpack.c.b16 %v703, %v691
        %v824 = vpack.c.b16 %v704, %v692
        %v825 = vpack.c.b16 %v705, %v693
        %v826 = vpack.c.b16 %v706, %v694
        %v827 = vpack.c.b16 %v707, %v695
        %v828 = vpack.c.b16 %v708, %v696
        %v829 = vpack.c.b16 %v721, %v709
        %v830 = vpack.c.b16 %v722, %v710
        %v831 = vpack.c.b16 %v723, %v711
        %v832 = vpack.c.b16 %v724, %v712
        %v833 = vpack.c.b16 %v725, %v713
        %v834 = vpack.c.b16 %v726, %v714
        %v835 = vpack.c.b16 %v727, %v715
        %v836 = vpack.c.b16 %v728, %v716
        %v837 = vpack.c.b16 %v729, %v717
        %v838 = vpack.c.b16 %v730, %v718
        %v839 = vpack.c.b16 %v731, %v719
        %v840 = vpack.c.b16 %v732, %v720
        %v841 = vpack.c.b16 %v745, %v733
        %v842 = vpack.c.b16 %v746, %v734
        %v843 = vpack.c.b16 %v747, %v735
        %v844 = vpack.c.b16 %v748, %v736
        %v845 = vpack.c.b16 %v749, %v737
        %v846 = vpack.c.b16 %v750, %v738
        %v847 = vpack.c.b16 %v751, %v739
        %v848 = vpack.c.b16 %v752, %v740
        %v849 = vpack.c.b16 %v753, %v741
        %v850 = vpack.c.b16 %v754, %v742
        %v851 = vpack.c.b16 %v755, %v743
        %v852 = vpack.c.b16 %v756, %v744
        %v1141 = vunpack.c.l.b16 %v277
        %v1142 = vunpack.c.l.b16 %v278
        %v1143 = vunpack.c.l.b16 %v279
        %v1144 = vunpack.c.l.b16 %v280
        %v1145 = vunpack.c.l.b16 %v281
        %v1146 = vunpack.c.l.b16 %v282
        %v1147 = vunpack.c.l.b16 %v283
        %v1148 = vunpack.c.l.b16 %v284
        %v1149 = vunpack.c.l.b16 %v285
        %v1150 = vunpack.c.l.b16 %v286
        %v1151 = vunpack.c.l.b16 %v287
        %v1152 = vunpack.c.l.b16 %v288
        %v1153 = vunpack.c.l.b16 %v289
        %v1154 = vunpack.c.l.b16 %v290
        %v1155 = vunpack.c.l.b16 %v291
        %v1156 = vunpack.c.l.b16 %v292
        %v1157 = vunpack.c.l.b16 %v293
        %v1158 = vunpack.c.l.b16 %v294
        %v1159 = vunpack.c.l.b16 %v295
        %v1160 = vunpack.c.l.b16 %v296
        %v1161 = vunpack.c.l.b16 %v297
        %v1162 = vunpack.c.l.b16 %v298
        %v1163 = vunpack.c.l.b16 %v299
        %v1164 = vunpack.c.l.b16 %v300
        %v1165 = vunpack.c.l.b16 %v301
        %v1166 = vunpack.c.l.b16 %v302
        %v1167 = vunpack.c.l.b16 %v303
        %v1168 = vunpack.c.l.b16 %v304
        %v1169 = vunpack.c.l.b16 %v305
        %v1170 = vunpack.c.l.b16 %v306
        %v1171 = vunpack.c.l.b16 %v307
        %v1172 = vunpack.c.l.b16 %v308
        %v1173 = vunpack.c.l.b16 %v309
        %v1174 = vunpack.c.l.b16 %v310
        %v1175 = vunpack.c.l.b16 %v311
        %v1176 = vunpack.c.l.b16 %v312
        %v1177 = vunpack.c.l.b16 %v313
        %v1178 = vunpack.c.l.b16 %v314
        %v1179 = vunpack.c.l.b16 %v315
        %v1180 = vunpack.c.l.b16 %v316
        %v1181 = vunpack.c.l.b16 %v317
        %v1182 = vunpack.c.l.b16 %v318
        %v1183 = vunpack.c.l.b16 %v319
        %v1184 = vunpack.c.l.b16 %v320
        %v1185 = vunpack.c.l.b16 %v321
        %v1186 = vunpack.c.l.b16 %v322
        %v1187 = vunpack.c.l.b16 %v323
        %v1188 = vunpack.c.l.b16 %v324
        %v1189 = vunpack.c.l.b16 %v325
        %v1190 = vunpack.c.l.b16 %v326
        %v1191 = vunpack.c.l.b16 %v327
        %v1192 = vunpack.c.l.b16 %v328
        %v1193 = vunpack.c.l.b16 %v329
        %v1194 = vunpack.c.l.b16 %v330
        %v1195 = vunpack.c.l.b16 %v331
        %v1196 = vunpack.c.l.b16 %v332
        %v1197 = vunpack.c.l.b16 %v333
        %v1198 = vunpack.c.l.b16 %v334
        %v1199 = vunpack.c.l.b16 %v335
        %v1200 = vunpack.c.l.b16 %v336
        %v1201 = vunpack.c.l.b16 %v337
        %v1202 = vunpack.c.l.b16 %v338
        %v1203 = vunpack.c.l.b16 %v339
        %v1204 = vunpack.c.l.b16 %v340
        %v1205 = vunpack.c.l.b16 %v341
        %v1206 = vunpack.c.l.b16 %v342
        %v1207 = vunpack.c.l.b16 %v343
        %v1208 = vunpack.c.l.b16 %v344
        %v1209 = vunpack.c.l.b16 %v345
        %v1210 = vunpack.c.l.b16 %v346
        %v1211 = vunpack.c.l.b16 %v347
        %v1212 = vunpack.c.l.b16 %v348
        %v1213 = vunpack.c.l.b16 %v349
        %v1214 = vunpack.c.l.b16 %v350
        %v1215 = vunpack.c.l.b16 %v351
        %v1216 = vunpack.c.l.b16 %v352
        %v1217 = vunpack.c.l.b16 %v353
        %v1218 = vunpack.c.l.b16 %v354
        %v1219 = vunpack.c.l.b16 %v355
        %v1220 = vunpack.c.l.b16 %v356
        %v1221 = vunpack.c.l.b16 %v357
        %v1222 = vunpack.c.l.b16 %v358
        %v1223 = vunpack.c.l.b16 %v359
        %v1224 = vunpack.c.l.b16 %v360
        %v1225 = vunpack.c.l.b16 %v361
        %v1226 = vunpack.c.l.b16 %v362
        %v1227 = vunpack.c.l.b16 %v363
        %v1228 = vunpack.c.l.b16 %v364
        %v1229 = vunpack.c.l.b16 %v365
        %v1230 = vunpack.c.l.b16 %v366
        %v1231 = vunpack.c.l.b16 %v367
        %v1232 = vunpack.c.l.b16 %v368
        %v1233 = vunpack.c.l.b16 %v369
        %v1234 = vunpack.c.l.b16 %v370
        %v1235 = vunpack.c.l.b16 %v371
        %v1236 = vunpack.c.l.b16 %v372
        %v1237 = vunpack.c.l.b16 %v373
        %v1238 = vunpack.c.l.b16 %v374
        %v1239 = vunpack.c.l.b16 %v375
        %v1240 = vunpack.c.l.b16 %v376
        %v1241 = vunpack.c.l.b16 %v377
        %v1242 = vunpack.c.l.b16 %v378
        %v1243 = vunpack.c.l.b16 %v379
        %v1244 = vunpack.c.l.b16 %v380
        %v1245 = vunpack.c.l.b16 %v381
        %v1246 = vunpack.c.l.b16 %v382
        %v1247 = vunpack.c.l.b16 %v383
        %v1248 = vunpack.c.l.b16 %v384
        %v1249 = vunpack.c.l.b16 %v385
        %v1250 = vunpack.c.l.b16 %v386
        %v1251 = vunpack.c.l.b16 %v387
        %v1252 = vunpack.c.l.b16 %v388
        %v1253 = vunpack.c.l.b16 %v389
        %v1254 = vunpack.c.l.b16 %v390
        %v1255 = vunpack.c.l.b16 %v391
        %v1256 = vunpack.c.l.b16 %v392
        %v1257 = vunpack.c.l.b16 %v393
        %v1258 = vunpack.c.l.b16 %v394
        %v1259 = vunpack.c.l.b16 %v395
        %v1260 = vunpack.c.l.b16 %v396
        %v1261 = vunpack.c.l.b16 %v397
        %v1262 = vunpack.c.l.b16 %v398
        %v1263 = vunpack.c.l.b16 %v399
        %v1264 = vunpack.c.l.b16 %v400
        %v1265 = vunpack.c.l.b16 %v401
        %v1266 = vunpack.c.l.b16 %v402
        %v1267 = vunpack.c.l.b16 %v403
        %v1268 = vunpack.c.l.b16 %v404
        %v1269 = vunpack.c.l.b16 %v405
        %v1270 = vunpack.c.l.b16 %v406
        %v1271 = vunpack.c.l.b16 %v407
        %v1272 = vunpack.c.l.b16 %v408
        %v1273 = vunpack.c.l.b16 %v409
        %v1274 = vunpack.c.l.b16 %v410
        %v1275 = vunpack.c.l.b16 %v411
        %v1276 = vunpack.c.l.b16 %v412
        %v1277 = vunpack.c.l.b16 %v413
        %v1278 = vunpack.c.l.b16 %v414
        %v1279 = vunpack.c.l.b16 %v415
        %v1280 = vunpack.c.l.b16 %v416
        %v1281 = vunpack.c.l.b16 %v417
        %v1282 = vunpack.c.l.b16 %v418
        %v1283 = vunpack.c.l.b16 %v419
        %v1284 = vunpack.c.l.b16 %v420
        %v1285 = vunpack.c.l.b16 %v421
        %v1286 = vunpack.c.l.b16 %v422
        %v1287 = vunpack.c.l.b16 %v423
        %v1288 = vunpack.c.l.b16 %v424
        %v1289 = vunpack.c.l.b16 %v425
        %v1290 = vunpack.c.l.b16 %v426
        %v1291 = vunpack.c.l.b16 %v427
        %v1292 = vunpack.c.l.b16 %v428
        %v1293 = vunpack.c.l.b16 %v429
        %v1294 = vunpack.c.l.b16 %v430
        %v1295 = vunpack.c.l.b16 %v431
        %v1296 = vunpack.c.l.b16 %v432
        %v1297 = vunpack.c.l.b16 %v433
        %v1298 = vunpack.c.l.b16 %v434
        %v1299 = vunpack.c.l.b16 %v435
        %v1300 = vunpack.c.l.b16 %v436
        %v1301 = vunpack.c.l.b16 %v437
        %v1302 = vunpack.c.l.b16 %v438
        %v1303 = vunpack.c.l.b16 %v439
        %v1304 = vunpack.c.l.b16 %v440
        %v1305 = vunpack.c.l.b16 %v441
        %v1306 = vunpack.c.l.b16 %v442
        %v1307 = vunpack.c.l.b16 %v443
        %v1308 = vunpack.c.l.b16 %v444
        %v1309 = vunpack.c.l.b16 %v445
        %v1310 = vunpack.c.l.b16 %v446
        %v1311 = vunpack.c.l.b16 %v447
        %v1312 = vunpack.c.l.b16 %v448
        %v1313 = vunpack.c.l.b16 %v449
        %v1314 = vunpack.c.l.b16 %v450
        %v1315 = vunpack.c.l.b16 %v451
        %v1316 = vunpack.c.l.b16 %v452
        %v1317 = vunpack.c.l.b16 %v453
        %v1318 = vunpack.c.l.b16 %v454
        %v1319 = vunpack.c.l.b16 %v455
        %v1320 = vunpack.c.l.b16 %v456
        %v1321 = vunpack.c.l.b16 %v457
        %v1322 = vunpack.c.l.b16 %v458
        %v1323 = vunpack.c.l.b16 %v459
        %v1324 = vunpack.c.l.b16 %v460
        %v1325 = vunpack.c.l.b16 %v461
        %v1326 = vunpack.c.l.b16 %v462
        %v1327 = vunpack.c.l.b16 %v463
        %v1328 = vunpack.c.l.b16 %v464
        %v1329 = vunpack.c.l.b16 %v465
        %v1330 = vunpack.c.l.b16 %v466
        %v1331 = vunpack.c.l.b16 %v467
        %v1332 = vunpack.c.l.b16 %v468
        %v1333 = vpack.c.b16 %v1142, %v1141
        %v1334 = vpack.c.b16 %v1144, %v1143
        %v1335 = vpack.c.b16 %v1146, %v1145
        %v1336 = vpack.c.b16 %v1148, %v1147
        %v1337 = vpack.c.b16 %v1150, %v1149
        %v1338 = vpack.c.b16 %v1152, %v1151
        %v1339 = vpack.c.b16 %v1154, %v1153
        %v1340 = vpack.c.b16 %v1156, %v1155
        %v1341 = vpack.c.b16 %v1158, %v1157
        %v1342 = vpack.c.b16 %v1160, %v1159
        %v1343 = vpack.c.b16 %v1162, %v1161
        %v1344 = vpack.c.b16 %v1164, %v1163
        %v1345 = vpack.c.b16 %v1166, %v1165
        %v1346 = vpack.c.b16 %v1168, %v1167
        %v1347 = vpack.c.b16 %v1170, %v1169
        %v1348 = vpack.c.b16 %v1172, %v1171
        %v1349 = vpack.c.b16 %v1174, %v1173
        %v1350 = vpack.c.b16 %v1176, %v1175
        %v1351 = vpack.c.b16 %v1178, %v1177
        %v1352 = vpack.c.b16 %v1180, %v1179
        %v1353 = vpack.c.b16 %v1182, %v1181
        %v1354 = vpack.c.b16 %v1184, %v1183
        %v1355 = vpack.c.b16 %v1186, %v1185
        %v1356 = vpack.c.b16 %v1188, %v1187
        %v1357 = vpack.c.b16 %v1190, %v1189
        %v1358 = vpack.c.b16 %v1192, %v1191
        %v1359 = vpack.c.b16 %v1194, %v1193
        %v1360 = vpack.c.b16 %v1196, %v1195
        %v1361 = vpack.c.b16 %v1198, %v1197
        %v1362 = vpack.c.b16 %v1200, %v1199
        %v1363 = vpack.c.b16 %v1202, %v1201
        %v1364 = vpack.c.b16 %v1204, %v1203
        %v1365 = vpack.c.b16 %v1206, %v1205
        %v1366 = vpack.c.b16 %v1208, %v1207
        %v1367 = vpack.c.b16 %v1210, %v1209
        %v1368 = vpack.c.b16 %v1212, %v1211
        %v1369 = vpack.c.b16 %v1214, %v1213
        %v1370 = vpack.c.b16 %v1216, %v1215
        %v1371 = vpack.c.b16 %v1218, %v1217
        %v1372 = vpack.c.b16 %v1220, %v1219
        %v1373 = vpack.c.b16 %v1222, %v1221
        %v1374 = vpack.c.b16 %v1224, %v1223
        %v1375 = vpack.c.b16 %v1226, %v1225
        %v1376 = vpack.c.b16 %v1228, %v1227
        %v1377 = vpack.c.b16 %v1230, %v1229
        %v1378 = vpack.c.b16 %v1232, %v1231
        %v1379 = vpack.c.b16 %v1234, %v1233
        %v1380 = vpack.c.b16 %v1236, %v1235
        %v1381 = vpack.c.b16 %v1238, %v1237
        %v1382 = vpack.c.b16 %v1240, %v1239
        %v1383 = vpack.c.b16 %v1242, %v1241
        %v1384 = vpack.c.b16 %v1244, %v1243
        %v1385 = vpack.c.b16 %v1246, %v1245
        %v1386 = vpack.c.b16 %v1248, %v1247
        %v1387 = vpack.c.b16 %v1250, %v1249
        %v1388 = vpack.c.b16 %v1252, %v1251
        %v1389 = vpack.c.b16 %v1254, %v1253
        %v1390 = vpack.c.b16 %v1256, %v1255
        %v1391 = vpack.c.b16 %v1258, %v1257
        %v1392 = vpack.c.b16 %v1260, %v1259
        %v1393 = vpack.c.b16 %v1262, %v1261
        %v1394 = vpack.c.b16 %v1264, %v1263
        %v1395 = vpack.c.b16 %v1266, %v1265
        %v1396 = vpack.c.b16 %v1268, %v1267
        %v1397 = vpack.c.b16 %v1270, %v1269
        %v1398 = vpack.c.b16 %v1272, %v1271
        %v1399 = vpack.c.b16 %v1274, %v1273
        %v1400 = vpack.c.b16 %v1276, %v1275
        %v1401 = vpack.c.b16 %v1278, %v1277
        %v1402 = vpack.c.b16 %v1280, %v1279
        %v1403 = vpack.c.b16 %v1282, %v1281
        %v1404 = vpack.c.b16 %v1284, %v1283
        %v1405 = vpack.c.b16 %v1286, %v1285
        %v1406 = vpack.c.b16 %v1288, %v1287
        %v1407 = vpack.c.b16 %v1290, %v1289
        %v1408 = vpack.c.b16 %v1292, %v1291
        %v1409 = vpack.c.b16 %v1294, %v1293
        %v1410 = vpack.c.b16 %v1296, %v1295
        %v1411 = vpack.c.b16 %v1298, %v1297
        %v1412 = vpack.c.b16 %v1300, %v1299
        %v1413 = vpack.c.b16 %v1302, %v1301
        %v1414 = vpack.c.b16 %v1304, %v1303
        %v1415 = vpack.c.b16 %v1306, %v1305
        %v1416 = vpack.c.b16 %v1308, %v1307
        %v1417 = vpack.c.b16 %v1310, %v1309
        %v1418 = vpack.c.b16 %v1312, %v1311
        %v1419 = vpack.c.b16 %v1314, %v1313
        %v1420 = vpack.c.b16 %v1316, %v1315
        %v1421 = vpack.c.b16 %v1318, %v1317
        %v1422 = vpack.c.b16 %v1320, %v1319
        %v1423 = vpack.c.b16 %v1322, %v1321
        %v1424 = vpack.c.b16 %v1324, %v1323
        %v1425 = vpack.c.b16 %v1326, %v1325
        %v1426 = vpack.c.b16 %v1328, %v1327
        %v1427 = vpack.c.b16 %v1330, %v1329
        %v1428 = vpack.c.b16 %v1332, %v1331
        %1525 = vmatprep.subr.bf16.mxu0 0
        %1526 = vmatpush1.bf16.msra.mxu0 %v1340
        %1527 = vmatprep.subr.bf16.mxu0 0
        %1528 = vmatpush1.bf16.msra.mxu0 %v1339
        %1529 = vmatprep.subr.bf16.mxu0 0
        %1530 = vmatpush1.bf16.msra.mxu0 %v1338
        %1531 = vmatprep.subr.bf16.mxu0 0
        %1532 = vmatpush1.bf16.msra.mxu0 %v1337
        %1533 = vmatprep.subr.bf16.mxu0 0
        %1534 = vmatpush1.bf16.msra.mxu0 %v1336
        %1535 = vmatprep.subr.bf16.mxu0 0
        %1536 = vmatpush1.bf16.msra.mxu0 %v1335
        %1537 = vmatprep.subr.bf16.mxu0 0
        %1538 = vmatpush1.bf16.msra.mxu0 %v1334
        %1539 = vmatprep.subr.bf16.mxu0 0
        %1540 = vmatpush1.bf16.msra.mxu0 %v1333
        %1541 = vmatprep.subr.bf16.mxu0 0
        %1542 = vmatpush2.bf16.msra.mxu0 %v1348
        %1543 = vmatprep.subr.bf16.mxu0 0
        %1544 = vmatpush2.bf16.msra.mxu0 %v1347
        %1545 = vmatprep.subr.bf16.mxu0 0
        %1546 = vmatpush2.bf16.msra.mxu0 %v1346
        %1547 = vmatprep.subr.bf16.mxu0 0
        %1548 = vmatpush2.bf16.msra.mxu0 %v1345
        %1549 = vmatprep.subr.bf16.mxu0 0
        %1550 = vmatpush2.bf16.msra.mxu0 %v1344
        %1551 = vmatprep.subr.bf16.mxu0 0
        %1552 = vmatpush2.bf16.msra.mxu0 %v1343
        %1553 = vmatprep.subr.bf16.mxu0 0
        %1554 = vmatpush2.bf16.msra.mxu0 %v1342
        %1555 = vmatprep.subr.bf16.mxu0 0
        %1556 = vmatpush2.bf16.msra.mxu0 %v1341
        %1557 = vmatprep.mubr.bf16.mxu0 %v758
        %1558 = vmatmul.mubr.bf16.gmra.mxu0 %v757
        %v1559 = vpop.f32.mrf.mxu0
        %v1560 = vadd.f32 0.0, %v1559
        %v1561 = vpop.f32.mrf.mxu0
        %v1562 = vpop.f32.mrf.mxu0
        %v1563 = vadd.f32 0.0, %v1562
        %v1564 = vpop.f32.mrf.mxu0
        %1565 = vmatprep.mubr.bf16.mxu0 %v770
        %1566 = vmatmul.mubr.bf16.gmra.mxu0 %v769
        %v1567 = vpop.f32.mrf.mxu0
        %v1568 = vadd.f32 0.0, %v1567
        %v1569 = vpop.f32.mrf.mxu0
        %v1570 = vpop.f32.mrf.mxu0
        %v1571 = vadd.f32 0.0, %v1570
        %v1572 = vpop.f32.mrf.mxu0
        %1573 = vmatprep.mubr.bf16.mxu0 %v782
        %1574 = vmatmul.mubr.bf16.gmra.mxu0 %v781
        %v1575 = vpop.f32.mrf.mxu0
        %v1576 = vadd.f32 0.0, %v1575
        %v1577 = vpop.f32.mrf.mxu0
        %v1578 = vpop.f32.mrf.mxu0
        %v1579 = vadd.f32 0.0, %v1578
        %v1580 = vpop.f32.mrf.mxu0
        %1581 = vmatprep.mubr.bf16.mxu0 %v794
        %1582 = vmatmul.mubr.bf16.gmra.mxu0 %v793
        %v1583 = vpop.f32.mrf.mxu0
        %v1584 = vadd.f32 0.0, %v1583
        %v1585 = vpop.f32.mrf.mxu0
        %v1586 = vpop.f32.mrf.mxu0
        %v1587 = vadd.f32 0.0, %v1586
        %v1588 = vpop.f32.mrf.mxu0
        %1589 = vmatprep.mubr.bf16.mxu0 %v806
        %1590 = vmatmul.mubr.bf16.gmra.mxu0 %v805
        %v1591 = vpop.f32.mrf.mxu0
        %v1592 = vadd.f32 0.0, %v1591
        %v1593 = vpop.f32.mrf.mxu0
        %v1594 = vpop.f32.mrf.mxu0
        %v1595 = vadd.f32 0.0, %v1594
        %v1596 = vpop.f32.mrf.mxu0
        %1597 = vmatprep.mubr.bf16.mxu0 %v818
        %1598 = vmatmul.mubr.bf16.gmra.mxu0 %v817
        %v1599 = vpop.f32.mrf.mxu0
        %v1600 = vadd.f32 0.0, %v1599
        %v1601 = vpop.f32.mrf.mxu0
        %v1602 = vpop.f32.mrf.mxu0
        %v1603 = vadd.f32 0.0, %v1602
        %v1604 = vpop.f32.mrf.mxu0
        %1605 = vmatprep.mubr.bf16.mxu0 %v830
        %1606 = vmatmul.mubr.bf16.gmra.mxu0 %v829
        %v1607 = vpop.f32.mrf.mxu0
        %v1608 = vadd.f32 0.0, %v1607
        %v1609 = vpop.f32.mrf.mxu0
        %v1610 = vpop.f32.mrf.mxu0
        %v1611 = vadd.f32 0.0, %v1610
        %v1612 = vpop.f32.mrf.mxu0
        %1613 = vmatprep.mubr.bf16.mxu0 %v842
        %1614 = vmatmul.mubr.bf16.gmra.mxu0 %v841
        %v1615 = vpop.f32.mrf.mxu0
        %v1616 = vadd.f32 0.0, %v1615
        %v1617 = vpop.f32.mrf.mxu0
        %v1618 = vpop.f32.mrf.mxu0
        %v1619 = vadd.f32 0.0, %v1618
        %v1620 = vpop.f32.mrf.mxu0
        %1621 = vdwg.mxu0
        %1622 = vmatprep.subr.bf16.mxu0 0
        %1623 = vmatpush1.bf16.msra.mxu0 %v1356
        %1624 = vmatprep.subr.bf16.mxu0 0
        %1625 = vmatpush1.bf16.msra.mxu0 %v1355
        %1626 = vmatprep.subr.bf16.mxu0 0
        %1627 = vmatpush1.bf16.msra.mxu0 %v1354
        %1628 = vmatprep.subr.bf16.mxu0 0
        %1629 = vmatpush1.bf16.msra.mxu0 %v1353
        %1630 = vmatprep.subr.bf16.mxu0 0
        %1631 = vmatpush1.bf16.msra.mxu0 %v1352
        %1632 = vmatprep.subr.bf16.mxu0 0
        %1633 = vmatpush1.bf16.msra.mxu0 %v1351
        %1634 = vmatprep.subr.bf16.mxu0 0
        %1635 = vmatpush1.bf16.msra.mxu0 %v1350
        %1636 = vmatprep.subr.bf16.mxu0 0
        %1637 = vmatpush1.bf16.msra.mxu0 %v1349
        %1638 = vmatprep.subr.bf16.mxu0 0
        %1639 = vmatpush2.bf16.msra.mxu0 %v1364
        %1640 = vmatprep.subr.bf16.mxu0 0
        %1641 = vmatpush2.bf16.msra.mxu0 %v1363
        %1642 = vmatprep.subr.bf16.mxu0 0
        %1643 = vmatpush2.bf16.msra.mxu0 %v1362
        %1644 = vmatprep.subr.bf16.mxu0 0
        %1645 = vmatpush2.bf16.msra.mxu0 %v1361
        %1646 = vmatprep.subr.bf16.mxu0 0
        %1647 = vmatpush2.bf16.msra.mxu0 %v1360
        %1648 = vmatprep.subr.bf16.mxu0 0
        %1649 = vmatpush2.bf16.msra.mxu0 %v1359
        %1650 = vmatprep.subr.bf16.mxu0 0
        %1651 = vmatpush2.bf16.msra.mxu0 %v1358
        %1652 = vmatprep.subr.bf16.mxu0 0
        %1653 = vmatpush2.bf16.msra.mxu0 %v1357
        %1654 = vmatprep.mubr.bf16.mxu0 %v760
        %1655 = vmatmul.mubr.bf16.gmra.mxu0 %v759
        %v1656 = vpop.f32.mrf.mxu0
        %v1657 = vadd.f32 %v1560, %v1656
        %v1658 = vpop.f32.mrf.mxu0
        %v1659 = vpop.f32.mrf.mxu0
        %v1660 = vadd.f32 %v1563, %v1659
        %v1661 = vpop.f32.mrf.mxu0
        %1662 = vmatprep.mubr.bf16.mxu0 %v772
        %1663 = vmatmul.mubr.bf16.gmra.mxu0 %v771
        %v1664 = vpop.f32.mrf.mxu0
        %v1665 = vadd.f32 %v1568, %v1664
        %v1666 = vpop.f32.mrf.mxu0
        %v1667 = vpop.f32.mrf.mxu0
        %v1668 = vadd.f32 %v1571, %v1667
        %v1669 = vpop.f32.mrf.mxu0
        %1670 = vmatprep.mubr.bf16.mxu0 %v784
        %1671 = vmatmul.mubr.bf16.gmra.mxu0 %v783
        %v1672 = vpop.f32.mrf.mxu0
        %v1673 = vadd.f32 %v1576, %v1672
        %v1674 = vpop.f32.mrf.mxu0
        %v1675 = vpop.f32.mrf.mxu0
        %v1676 = vadd.f32 %v1579, %v1675
        %v1677 = vpop.f32.mrf.mxu0
        %1678 = vmatprep.mubr.bf16.mxu0 %v796
        %1679 = vmatmul.mubr.bf16.gmra.mxu0 %v795
        %v1680 = vpop.f32.mrf.mxu0
        %v1681 = vadd.f32 %v1584, %v1680
        %v1682 = vpop.f32.mrf.mxu0
        %v1683 = vpop.f32.mrf.mxu0
        %v1684 = vadd.f32 %v1587, %v1683
        %v1685 = vpop.f32.mrf.mxu0
        %1686 = vmatprep.mubr.bf16.mxu0 %v808
        %1687 = vmatmul.mubr.bf16.gmra.mxu0 %v807
        %v1688 = vpop.f32.mrf.mxu0
        %v1689 = vadd.f32 %v1592, %v1688
        %v1690 = vpop.f32.mrf.mxu0
        %v1691 = vpop.f32.mrf.mxu0
        %v1692 = vadd.f32 %v1595, %v1691
        %v1693 = vpop.f32.mrf.mxu0
        %1694 = vmatprep.mubr.bf16.mxu0 %v820
        %1695 = vmatmul.mubr.bf16.gmra.mxu0 %v819
        %v1696 = vpop.f32.mrf.mxu0
        %v1697 = vadd.f32 %v1600, %v1696
        %v1698 = vpop.f32.mrf.mxu0
        %v1699 = vpop.f32.mrf.mxu0
        %v1700 = vadd.f32 %v1603, %v1699
        %v1701 = vpop.f32.mrf.mxu0
        %1702 = vmatprep.mubr.bf16.mxu0 %v832
        %1703 = vmatmul.mubr.bf16.gmra.mxu0 %v831
        %v1704 = vpop.f32.mrf.mxu0
        %v1705 = vadd.f32 %v1608, %v1704
        %v1706 = vpop.f32.mrf.mxu0
        %v1707 = vpop.f32.mrf.mxu0
        %v1708 = vadd.f32 %v1611, %v1707
        %v1709 = vpop.f32.mrf.mxu0
        %1710 = vmatprep.mubr.bf16.mxu0 %v844
        %1711 = vmatmul.mubr.bf16.gmra.mxu0 %v843
        %v1712 = vpop.f32.mrf.mxu0
        %v1713 = vadd.f32 %v1616, %v1712
        %v1714 = vpop.f32.mrf.mxu0
        %v1715 = vpop.f32.mrf.mxu0
        %v1716 = vadd.f32 %v1619, %v1715
        %v1717 = vpop.f32.mrf.mxu0
        %1718 = vdwg.mxu0
        %1719 = vmatprep.subr.bf16.mxu0 0
        %1720 = vmatpush1.bf16.msra.mxu0 %v1372
        %1721 = vmatprep.subr.bf16.mxu0 0
        %1722 = vmatpush1.bf16.msra.mxu0 %v1371
        %1723 = vmatprep.subr.bf16.mxu0 0
        %1724 = vmatpush1.bf16.msra.mxu0 %v1370
        %1725 = vmatprep.subr.bf16.mxu0 0
        %1726 = vmatpush1.bf16.msra.mxu0 %v1369
        %1727 = vmatprep.subr.bf16.mxu0 0
        %1728 = vmatpush1.bf16.msra.mxu0 %v1368
        %1729 = vmatprep.subr.bf16.mxu0 0
        %1730 = vmatpush1.bf16.msra.mxu0 %v1367
        %1731 = vmatprep.subr.bf16.mxu0 0
        %1732 = vmatpush1.bf16.msra.mxu0 %v1366
        %1733 = vmatprep.subr.bf16.mxu0 0
        %1734 = vmatpush1.bf16.msra.mxu0 %v1365
        %1735 = vmatprep.subr.bf16.mxu0 0
        %1736 = vmatpush2.bf16.msra.mxu0 %v1380
        %1737 = vmatprep.subr.bf16.mxu0 0
        %1738 = vmatpush2.bf16.msra.mxu0 %v1379
        %1739 = vmatprep.subr.bf16.mxu0 0
        %1740 = vmatpush2.bf16.msra.mxu0 %v1378
        %1741 = vmatprep.subr.bf16.mxu0 0
        %1742 = vmatpush2.bf16.msra.mxu0 %v1377
        %1743 = vmatprep.subr.bf16.mxu0 0
        %1744 = vmatpush2.bf16.msra.mxu0 %v1376
        %1745 = vmatprep.subr.bf16.mxu0 0
        %1746 = vmatpush2.bf16.msra.mxu0 %v1375
        %1747 = vmatprep.subr.bf16.mxu0 0
        %1748 = vmatpush2.bf16.msra.mxu0 %v1374
        %1749 = vmatprep.subr.bf16.mxu0 0
        %1750 = vmatpush2.bf16.msra.mxu0 %v1373
        %1751 = vmatprep.mubr.bf16.mxu0 %v762
        %1752 = vmatmul.mubr.bf16.gmra.mxu0 %v761
        %v1753 = vpop.f32.mrf.mxu0
        %v1754 = vadd.f32 %v1657, %v1753
        %v1755 = vpop.f32.mrf.mxu0
        %v1756 = vpop.f32.mrf.mxu0
        %v1757 = vadd.f32 %v1660, %v1756
        %v1758 = vpop.f32.mrf.mxu0
        %1759 = vmatprep.mubr.bf16.mxu0 %v774
        %1760 = vmatmul.mubr.bf16.gmra.mxu0 %v773
        %v1761 = vpop.f32.mrf.mxu0
        %v1762 = vadd.f32 %v1665, %v1761
        %v1763 = vpop.f32.mrf.mxu0
        %v1764 = vpop.f32.mrf.mxu0
        %v1765 = vadd.f32 %v1668, %v1764
        %v1766 = vpop.f32.mrf.mxu0
        %1767 = vmatprep.mubr.bf16.mxu0 %v786
        %1768 = vmatmul.mubr.bf16.gmra.mxu0 %v785
        %v1769 = vpop.f32.mrf.mxu0
        %v1770 = vadd.f32 %v1673, %v1769
        %v1771 = vpop.f32.mrf.mxu0
        %v1772 = vpop.f32.mrf.mxu0
        %v1773 = vadd.f32 %v1676, %v1772
        %v1774 = vpop.f32.mrf.mxu0
        %1775 = vmatprep.mubr.bf16.mxu0 %v798
        %1776 = vmatmul.mubr.bf16.gmra.mxu0 %v797
        %v1777 = vpop.f32.mrf.mxu0
        %v1778 = vadd.f32 %v1681, %v1777
        %v1779 = vpop.f32.mrf.mxu0
        %v1780 = vpop.f32.mrf.mxu0
        %v1781 = vadd.f32 %v1684, %v1780
        %v1782 = vpop.f32.mrf.mxu0
        %1783 = vmatprep.mubr.bf16.mxu0 %v810
        %1784 = vmatmul.mubr.bf16.gmra.mxu0 %v809
        %v1785 = vpop.f32.mrf.mxu0
        %v1786 = vadd.f32 %v1689, %v1785
        %v1787 = vpop.f32.mrf.mxu0
        %v1788 = vpop.f32.mrf.mxu0
        %v1789 = vadd.f32 %v1692, %v1788
        %v1790 = vpop.f32.mrf.mxu0
        %1791 = vmatprep.mubr.bf16.mxu0 %v822
        %1792 = vmatmul.mubr.bf16.gmra.mxu0 %v821
        %v1793 = vpop.f32.mrf.mxu0
        %v1794 = vadd.f32 %v1697, %v1793
        %v1795 = vpop.f32.mrf.mxu0
        %v1796 = vpop.f32.mrf.mxu0
        %v1797 = vadd.f32 %v1700, %v1796
        %v1798 = vpop.f32.mrf.mxu0
        %1799 = vmatprep.mubr.bf16.mxu0 %v834
        %1800 = vmatmul.mubr.bf16.gmra.mxu0 %v833
        %v1801 = vpop.f32.mrf.mxu0
        %v1802 = vadd.f32 %v1705, %v1801
        %v1803 = vpop.f32.mrf.mxu0
        %v1804 = vpop.f32.mrf.mxu0
        %v1805 = vadd.f32 %v1708, %v1804
        %v1806 = vpop.f32.mrf.mxu0
        %1807 = vmatprep.mubr.bf16.mxu0 %v846
        %1808 = vmatmul.mubr.bf16.gmra.mxu0 %v845
        %v1809 = vpop.f32.mrf.mxu0
        %v1810 = vadd.f32 %v1713, %v1809
        %v1811 = vpop.f32.mrf.mxu0
        %v1812 = vpop.f32.mrf.mxu0
        %v1813 = vadd.f32 %v1716, %v1812
        %v1814 = vpop.f32.mrf.mxu0
        %1815 = vdwg.mxu0
        %1816 = vmatprep.subr.bf16.mxu0 0
        %1817 = vmatpush1.bf16.msra.mxu0 %v1388
        %1818 = vmatprep.subr.bf16.mxu0 0
        %1819 = vmatpush1.bf16.msra.mxu0 %v1387
        %1820 = vmatprep.subr.bf16.mxu0 0
        %1821 = vmatpush1.bf16.msra.mxu0 %v1386
        %1822 = vmatprep.subr.bf16.mxu0 0
        %1823 = vmatpush1.bf16.msra.mxu0 %v1385
        %1824 = vmatprep.subr.bf16.mxu0 0
        %1825 = vmatpush1.bf16.msra.mxu0 %v1384
        %1826 = vmatprep.subr.bf16.mxu0 0
        %1827 = vmatpush1.bf16.msra.mxu0 %v1383
        %1828 = vmatprep.subr.bf16.mxu0 0
        %1829 = vmatpush1.bf16.msra.mxu0 %v1382
        %1830 = vmatprep.subr.bf16.mxu0 0
        %1831 = vmatpush1.bf16.msra.mxu0 %v1381
        %1832 = vmatprep.subr.bf16.mxu0 0
        %1833 = vmatpush2.bf16.msra.mxu0 %v1396
        %1834 = vmatprep.subr.bf16.mxu0 0
        %1835 = vmatpush2.bf16.msra.mxu0 %v1395
        %1836 = vmatprep.subr.bf16.mxu0 0
        %1837 = vmatpush2.bf16.msra.mxu0 %v1394
        %1838 = vmatprep.subr.bf16.mxu0 0
        %1839 = vmatpush2.bf16.msra.mxu0 %v1393
        %1840 = vmatprep.subr.bf16.mxu0 0
        %1841 = vmatpush2.bf16.msra.mxu0 %v1392
        %1842 = vmatprep.subr.bf16.mxu0 0
        %1843 = vmatpush2.bf16.msra.mxu0 %v1391
        %1844 = vmatprep.subr.bf16.mxu0 0
        %1845 = vmatpush2.bf16.msra.mxu0 %v1390
        %1846 = vmatprep.subr.bf16.mxu0 0
        %1847 = vmatpush2.bf16.msra.mxu0 %v1389
        %1848 = vmatprep.mubr.bf16.mxu0 %v764
        %1849 = vmatmul.mubr.bf16.gmra.mxu0 %v763
        %v1850 = vpop.f32.mrf.mxu0
        %v1851 = vadd.f32 %v1754, %v1850
        %v1852 = vpop.f32.mrf.mxu0
        %v1853 = vpop.f32.mrf.mxu0
        %v1854 = vadd.f32 %v1757, %v1853
        %v1855 = vpop.f32.mrf.mxu0
        %1856 = vmatprep.mubr.bf16.mxu0 %v776
        %1857 = vmatmul.mubr.bf16.gmra.mxu0 %v775
        %v1858 = vpop.f32.mrf.mxu0
        %v1859 = vadd.f32 %v1762, %v1858
        %v1860 = vpop.f32.mrf.mxu0
        %v1861 = vpop.f32.mrf.mxu0
        %v1862 = vadd.f32 %v1765, %v1861
        %v1863 = vpop.f32.mrf.mxu0
        %1864 = vmatprep.mubr.bf16.mxu0 %v788
        %1865 = vmatmul.mubr.bf16.gmra.mxu0 %v787
        %v1866 = vpop.f32.mrf.mxu0
        %v1867 = vadd.f32 %v1770, %v1866
        %v1868 = vpop.f32.mrf.mxu0
        %v1869 = vpop.f32.mrf.mxu0
        %v1870 = vadd.f32 %v1773, %v1869
        %v1871 = vpop.f32.mrf.mxu0
        %1872 = vmatprep.mubr.bf16.mxu0 %v800
        %1873 = vmatmul.mubr.bf16.gmra.mxu0 %v799
        %v1874 = vpop.f32.mrf.mxu0
        %v1875 = vadd.f32 %v1778, %v1874
        %v1876 = vpop.f32.mrf.mxu0
        %v1877 = vpop.f32.mrf.mxu0
        %v1878 = vadd.f32 %v1781, %v1877
        %v1879 = vpop.f32.mrf.mxu0
        %1880 = vmatprep.mubr.bf16.mxu0 %v812
        %1881 = vmatmul.mubr.bf16.gmra.mxu0 %v811
        %v1882 = vpop.f32.mrf.mxu0
        %v1883 = vadd.f32 %v1786, %v1882
        %v1884 = vpop.f32.mrf.mxu0
        %v1885 = vpop.f32.mrf.mxu0
        %v1886 = vadd.f32 %v1789, %v1885
        %v1887 = vpop.f32.mrf.mxu0
        %1888 = vmatprep.mubr.bf16.mxu0 %v824
        %1889 = vmatmul.mubr.bf16.gmra.mxu0 %v823
        %v1890 = vpop.f32.mrf.mxu0
        %v1891 = vadd.f32 %v1794, %v1890
        %v1892 = vpop.f32.mrf.mxu0
        %v1893 = vpop.f32.mrf.mxu0
        %v1894 = vadd.f32 %v1797, %v1893
        %v1895 = vpop.f32.mrf.mxu0
        %1896 = vmatprep.mubr.bf16.mxu0 %v836
        %1897 = vmatmul.mubr.bf16.gmra.mxu0 %v835
        %v1898 = vpop.f32.mrf.mxu0
        %v1899 = vadd.f32 %v1802, %v1898
        %v1900 = vpop.f32.mrf.mxu0
        %v1901 = vpop.f32.mrf.mxu0
        %v1902 = vadd.f32 %v1805, %v1901
        %v1903 = vpop.f32.mrf.mxu0
        %1904 = vmatprep.mubr.bf16.mxu0 %v848
        %1905 = vmatmul.mubr.bf16.gmra.mxu0 %v847
        %v1906 = vpop.f32.mrf.mxu0
        %v1907 = vadd.f32 %v1810, %v1906
        %v1908 = vpop.f32.mrf.mxu0
        %v1909 = vpop.f32.mrf.mxu0
        %v1910 = vadd.f32 %v1813, %v1909
        %v1911 = vpop.f32.mrf.mxu0
        %1912 = vdwg.mxu0
        %1913 = vmatprep.subr.bf16.mxu0 0
        %1914 = vmatpush1.bf16.msra.mxu0 %v1404
        %1915 = vmatprep.subr.bf16.mxu0 0
        %1916 = vmatpush1.bf16.msra.mxu0 %v1403
        %1917 = vmatprep.subr.bf16.mxu0 0
        %1918 = vmatpush1.bf16.msra.mxu0 %v1402
        %1919 = vmatprep.subr.bf16.mxu0 0
        %1920 = vmatpush1.bf16.msra.mxu0 %v1401
        %1921 = vmatprep.subr.bf16.mxu0 0
        %1922 = vmatpush1.bf16.msra.mxu0 %v1400
        %1923 = vmatprep.subr.bf16.mxu0 0
        %1924 = vmatpush1.bf16.msra.mxu0 %v1399
        %1925 = vmatprep.subr.bf16.mxu0 0
        %1926 = vmatpush1.bf16.msra.mxu0 %v1398
        %1927 = vmatprep.subr.bf16.mxu0 0
        %1928 = vmatpush1.bf16.msra.mxu0 %v1397
        %1929 = vmatprep.subr.bf16.mxu0 0
        %1930 = vmatpush2.bf16.msra.mxu0 %v1412
        %1931 = vmatprep.subr.bf16.mxu0 0
        %1932 = vmatpush2.bf16.msra.mxu0 %v1411
        %1933 = vmatprep.subr.bf16.mxu0 0
        %1934 = vmatpush2.bf16.msra.mxu0 %v1410
        %1935 = vmatprep.subr.bf16.mxu0 0
        %1936 = vmatpush2.bf16.msra.mxu0 %v1409
        %1937 = vmatprep.subr.bf16.mxu0 0
        %1938 = vmatpush2.bf16.msra.mxu0 %v1408
        %1939 = vmatprep.subr.bf16.mxu0 0
        %1940 = vmatpush2.bf16.msra.mxu0 %v1407
        %1941 = vmatprep.subr.bf16.mxu0 0
        %1942 = vmatpush2.bf16.msra.mxu0 %v1406
        %1943 = vmatprep.subr.bf16.mxu0 0
        %1944 = vmatpush2.bf16.msra.mxu0 %v1405
        %1945 = vmatprep.mubr.bf16.mxu0 %v766
        %1946 = vmatmul.mubr.bf16.gmra.mxu0 %v765
        %v1947 = vpop.f32.mrf.mxu0
        %v1948 = vadd.f32 %v1851, %v1947
        %v1949 = vpop.f32.mrf.mxu0
        %v1950 = vpop.f32.mrf.mxu0
        %v1951 = vadd.f32 %v1854, %v1950
        %v1952 = vpop.f32.mrf.mxu0
        %1953 = vmatprep.mubr.bf16.mxu0 %v778
        %1954 = vmatmul.mubr.bf16.gmra.mxu0 %v777
        %v1955 = vpop.f32.mrf.mxu0
        %v1956 = vadd.f32 %v1859, %v1955
        %v1957 = vpop.f32.mrf.mxu0
        %v1958 = vpop.f32.mrf.mxu0
        %v1959 = vadd.f32 %v1862, %v1958
        %v1960 = vpop.f32.mrf.mxu0
        %1961 = vmatprep.mubr.bf16.mxu0 %v790
        %1962 = vmatmul.mubr.bf16.gmra.mxu0 %v789
        %v1963 = vpop.f32.mrf.mxu0
        %v1964 = vadd.f32 %v1867, %v1963
        %v1965 = vpop.f32.mrf.mxu0
        %v1966 = vpop.f32.mrf.mxu0
        %v1967 = vadd.f32 %v1870, %v1966
        %v1968 = vpop.f32.mrf.mxu0
        %1969 = vmatprep.mubr.bf16.mxu0 %v802
        %1970 = vmatmul.mubr.bf16.gmra.mxu0 %v801
        %v1971 = vpop.f32.mrf.mxu0
        %v1972 = vadd.f32 %v1875, %v1971
        %v1973 = vpop.f32.mrf.mxu0
        %v1974 = vpop.f32.mrf.mxu0
        %v1975 = vadd.f32 %v1878, %v1974
        %v1976 = vpop.f32.mrf.mxu0
        %1977 = vmatprep.mubr.bf16.mxu0 %v814
        %1978 = vmatmul.mubr.bf16.gmra.mxu0 %v813
        %v1979 = vpop.f32.mrf.mxu0
        %v1980 = vadd.f32 %v1883, %v1979
        %v1981 = vpop.f32.mrf.mxu0
        %v1982 = vpop.f32.mrf.mxu0
        %v1983 = vadd.f32 %v1886, %v1982
        %v1984 = vpop.f32.mrf.mxu0
        %1985 = vmatprep.mubr.bf16.mxu0 %v826
        %1986 = vmatmul.mubr.bf16.gmra.mxu0 %v825
        %v1987 = vpop.f32.mrf.mxu0
        %v1988 = vadd.f32 %v1891, %v1987
        %v1989 = vpop.f32.mrf.mxu0
        %v1990 = vpop.f32.mrf.mxu0
        %v1991 = vadd.f32 %v1894, %v1990
        %v1992 = vpop.f32.mrf.mxu0
        %1993 = vmatprep.mubr.bf16.mxu0 %v838
        %1994 = vmatmul.mubr.bf16.gmra.mxu0 %v837
        %v1995 = vpop.f32.mrf.mxu0
        %v1996 = vadd.f32 %v1899, %v1995
        %v1997 = vpop.f32.mrf.mxu0
        %v1998 = vpop.f32.mrf.mxu0
        %v1999 = vadd.f32 %v1902, %v1998
        %v2000 = vpop.f32.mrf.mxu0
        %2001 = vmatprep.mubr.bf16.mxu0 %v850
        %2002 = vmatmul.mubr.bf16.gmra.mxu0 %v849
        %v2003 = vpop.f32.mrf.mxu0
        %v2004 = vadd.f32 %v1907, %v2003
        %v2005 = vpop.f32.mrf.mxu0
        %v2006 = vpop.f32.mrf.mxu0
        %v2007 = vadd.f32 %v1910, %v2006
        %v2008 = vpop.f32.mrf.mxu0
        %2009 = vdwg.mxu0
        %2010 = vmatprep.subr.bf16.mxu0 0
        %2011 = vmatpush1.bf16.msra.mxu0 %v1420
        %2012 = vmatprep.subr.bf16.mxu0 0
        %2013 = vmatpush1.bf16.msra.mxu0 %v1419
        %2014 = vmatprep.subr.bf16.mxu0 0
        %2015 = vmatpush1.bf16.msra.mxu0 %v1418
        %2016 = vmatprep.subr.bf16.mxu0 0
        %2017 = vmatpush1.bf16.msra.mxu0 %v1417
        %2018 = vmatprep.subr.bf16.mxu0 0
        %2019 = vmatpush1.bf16.msra.mxu0 %v1416
        %2020 = vmatprep.subr.bf16.mxu0 0
        %2021 = vmatpush1.bf16.msra.mxu0 %v1415
        %2022 = vmatprep.subr.bf16.mxu0 0
        %2023 = vmatpush1.bf16.msra.mxu0 %v1414
        %2024 = vmatprep.subr.bf16.mxu0 0
        %2025 = vmatpush1.bf16.msra.mxu0 %v1413
        %2026 = vmatprep.subr.bf16.mxu0 0
        %2027 = vmatpush2.bf16.msra.mxu0 %v1428
        %2028 = vmatprep.subr.bf16.mxu0 0
        %2029 = vmatpush2.bf16.msra.mxu0 %v1427
        %2030 = vmatprep.subr.bf16.mxu0 0
        %2031 = vmatpush2.bf16.msra.mxu0 %v1426
        %2032 = vmatprep.subr.bf16.mxu0 0
        %2033 = vmatpush2.bf16.msra.mxu0 %v1425
        %2034 = vmatprep.subr.bf16.mxu0 0
        %2035 = vmatpush2.bf16.msra.mxu0 %v1424
        %2036 = vmatprep.subr.bf16.mxu0 0
        %2037 = vmatpush2.bf16.msra.mxu0 %v1423
        %2038 = vmatprep.subr.bf16.mxu0 0
        %2039 = vmatpush2.bf16.msra.mxu0 %v1422
        %2040 = vmatprep.subr.bf16.mxu0 0
        %2041 = vmatpush2.bf16.msra.mxu0 %v1421
        %2042 = vmatprep.mubr.bf16.mxu0 %v768
        %2043 = vmatmul.mubr.bf16.gmra.mxu0 %v767
        %v2044 = vpop.f32.mrf.mxu0
        %v2045 = vadd.f32 %v1948, %v2044
        %v2046 = vpop.f32.mrf.mxu0
        %v2047 = vpop.f32.mrf.mxu0
        %v2048 = vadd.f32 %v1951, %v2047
        %v2049 = vpop.f32.mrf.mxu0
        %2050 = vmatprep.mubr.bf16.mxu0 %v780
        %2051 = vmatmul.mubr.bf16.gmra.mxu0 %v779
        %v2052 = vpop.f32.mrf.mxu0
        %v2053 = vadd.f32 %v1956, %v2052
        %v2054 = vpop.f32.mrf.mxu0
        %v2055 = vpop.f32.mrf.mxu0
        %v2056 = vadd.f32 %v1959, %v2055
        %v2057 = vpop.f32.mrf.mxu0
        %2058 = vmatprep.mubr.bf16.mxu0 %v792
        %2059 = vmatmul.mubr.bf16.gmra.mxu0 %v791
        %v2060 = vpop.f32.mrf.mxu0
        %v2061 = vadd.f32 %v1964, %v2060
        %v2062 = vpop.f32.mrf.mxu0
        %v2063 = vpop.f32.mrf.mxu0
        %v2064 = vadd.f32 %v1967, %v2063
        %v2065 = vpop.f32.mrf.mxu0
        %2066 = vmatprep.mubr.bf16.mxu0 %v804
        %2067 = vmatmul.mubr.bf16.gmra.mxu0 %v803
        %v2068 = vpop.f32.mrf.mxu0
        %v2069 = vadd.f32 %v1972, %v2068
        %v2070 = vpop.f32.mrf.mxu0
        %v2071 = vpop.f32.mrf.mxu0
        %v2072 = vadd.f32 %v1975, %v2071
        %v2073 = vpop.f32.mrf.mxu0
        %2074 = vmatprep.mubr.bf16.mxu0 %v816
        %2075 = vmatmul.mubr.bf16.gmra.mxu0 %v815
        %v2076 = vpop.f32.mrf.mxu0
        %v2077 = vadd.f32 %v1980, %v2076
        %v2078 = vpop.f32.mrf.mxu0
        %v2079 = vpop.f32.mrf.mxu0
        %v2080 = vadd.f32 %v1983, %v2079
        %v2081 = vpop.f32.mrf.mxu0
        %2082 = vmatprep.mubr.bf16.mxu0 %v828
        %2083 = vmatmul.mubr.bf16.gmra.mxu0 %v827
        %v2084 = vpop.f32.mrf.mxu0
        %v2085 = vadd.f32 %v1988, %v2084
        %v2086 = vpop.f32.mrf.mxu0
        %v2087 = vpop.f32.mrf.mxu0
        %v2088 = vadd.f32 %v1991, %v2087
        %v2089 = vpop.f32.mrf.mxu0
        %2090 = vmatprep.mubr.bf16.mxu0 %v840
        %2091 = vmatmul.mubr.bf16.gmra.mxu0 %v839
        %v2092 = vpop.f32.mrf.mxu0
        %v2093 = vadd.f32 %v1996, %v2092
        %v2094 = vpop.f32.mrf.mxu0
        %v2095 = vpop.f32.mrf.mxu0
        %v2096 = vadd.f32 %v1999, %v2095
        %v2097 = vpop.f32.mrf.mxu0
        %2098 = vmatprep.mubr.bf16.mxu0 %v852
        %2099 = vmatmul.mubr.bf16.gmra.mxu0 %v851
        %v2100 = vpop.f32.mrf.mxu0
        %v2101 = vadd.f32 %v2004, %v2100
        %v2102 = vpop.f32.mrf.mxu0
        %v2103 = vpop.f32.mrf.mxu0
        %v2104 = vadd.f32 %v2007, %v2103
        %v2105 = vpop.f32.mrf.mxu0
        %2106 = vdwg.mxu0
        %v2107 = vpack.c.bf16 %v2048, %v2045
        %v2108 = vpack.c.bf16 %v2056, %v2053
        %v2109 = vpack.c.bf16 %v2064, %v2061
        %v2110 = vpack.c.bf16 %v2072, %v2069
        %v2111 = vpack.c.bf16 %v2080, %v2077
        %v2112 = vpack.c.bf16 %v2088, %v2085
        %v2113 = vpack.c.bf16 %v2096, %v2093
        %v2114 = vpack.c.bf16 %v2104, %v2101
        %v2123 = vunpack.c.l.b16 %v2107
        %v2124 = vunpack.c.h.b16 %v2107
        %v2125 = vunpack.c.l.b16 %v2108
        %v2126 = vunpack.c.h.b16 %v2108
        %v2127 = vunpack.c.l.b16 %v2109
        %v2128 = vunpack.c.h.b16 %v2109
        %v2129 = vunpack.c.l.b16 %v2110
        %v2130 = vunpack.c.h.b16 %v2110
        %v2131 = vunpack.c.l.b16 %v2111
        %v2132 = vunpack.c.h.b16 %v2111
        %v2133 = vunpack.c.l.b16 %v2112
        %v2134 = vunpack.c.h.b16 %v2112
        %v2135 = vunpack.c.l.b16 %v2113
        %v2136 = vunpack.c.h.b16 %v2113
        %v2137 = vunpack.c.l.b16 %v2114
        %v2138 = vunpack.c.h.b16 %v2114
        %v2139 = vpack.c.b16 %v2123, %v2123
        %v2140 = vpack.c.b16 %v2124, %v2124
        %v2141 = vpack.c.b16 %v2125, %v2125
        %v2142 = vpack.c.b16 %v2126, %v2126
        %v2143 = vpack.c.b16 %v2127, %v2127
        %v2144 = vpack.c.b16 %v2128, %v2128
        %v2145 = vpack.c.b16 %v2129, %v2129
        %v2146 = vpack.c.b16 %v2130, %v2130
        %v2147 = vpack.c.b16 %v2131, %v2131
        %v2148 = vpack.c.b16 %v2132, %v2132
        %v2149 = vpack.c.b16 %v2133, %v2133
        %v2150 = vpack.c.b16 %v2134, %v2134
        %v2151 = vpack.c.b16 %v2135, %v2135
        %v2152 = vpack.c.b16 %v2136, %v2136
        %v2153 = vpack.c.b16 %v2137, %v2137
        %v2154 = vpack.c.b16 %v2138, %v2138
        %2171 = vst [vmem:[%s177] sm:$0xf] %v2139
        %2172 = vst [vmem:[%s177 + $0x4] sm:$0xf] %v2140
        %2173 = vst [vmem:[%s177 + $0x8] sm:$0xf] %v2141
        %2174 = vst [vmem:[%s177 + $0xc] sm:$0xf] %v2142
        %2175 = vst [vmem:[%s177 + $0x10] sm:$0xf] %v2143
        %2176 = vst [vmem:[%s177 + $0x14] sm:$0xf] %v2144
        %2177 = vst [vmem:[%s177 + $0x18] sm:$0xf] %v2145
        %2178 = vst [vmem:[%s177 + $0x1c] sm:$0xf] %v2146
        %2179 = vst [vmem:[%s177 + $0x20] sm:$0xf] %v2147
        %2180 = vst [vmem:[%s177 + $0x24] sm:$0xf] %v2148
        %2181 = vst [vmem:[%s177 + $0x28] sm:$0xf] %v2149
        %2182 = vst [vmem:[%s177 + $0x2c] sm:$0xf] %v2150
        %2183 = vst [vmem:[%s177 + $0x30] sm:$0xf] %v2151
        %2184 = vst [vmem:[%s177 + $0x34] sm:$0xf] %v2152
        %2185 = vst [vmem:[%s177 + $0x38] sm:$0xf] %v2153
        %2186 = vst [vmem:[%s177 + $0x3c] sm:$0xf] %v2154
        %s2187 = sand.u32 %s75, 1
        %s2188 = scalar_lea.sflag [#allocation4], %s2187
        %s2189 = sand.u32 %s75, 1
        %s2190 = smul.addr %s2189, 64
        %s2191 = scalar_lea.vmem [#allocation7], %s2190
        // Predicated region
        $region37: #{tpu_custom_call.1} parent=27 // pred_check
          %p2192 = pneg %p85
        $region38: #{tpu_custom_call.1} parent=27 // pred_check_branch
          %2194 = sbr.rel (%p2192) target = $region40
        $region39: #{tpu_custom_call.1} parent=27 // pred_region
          %s2195 = smul.u32 16, %s20
          %s2197 = ssub.s32 1024, 1024
          %2198 = vsyncadd %s2188, %s2197
          %s2199 = smul.addr %s2195, 64
          %s2200 = scalar_lea.hbm %s2, %s2199
          %s2201 = sshll.u32 %s2191, 4
          %s2202 = int_to_ptr.vmem [resolvable:$true] %s2201
          %2207 = dma.vmem_to_hbm [thread:$0]  %s2202, 1024, %s2200, %s2188, 64, 64, 4
        $region40: #{tpu_custom_call.1} parent=27 // pred_fallthru
          _
      $region28: #{tpu_custom_call.1} parent=5 // pred_fallthru
        _
      %p2208 = scmp.le.s32.totalorder 2, %s15
      // Predicated region
      $region41: #{tpu_custom_call.1} parent=5 // pred_check
        %p2209 = pneg %p2208
      $region42: #{tpu_custom_call.1} parent=5 // pred_check_branch
        %2211 = sbr.rel (%p2209) target = $region44
      $region43: #{tpu_custom_call.1} parent=5 // pred_region
        %s2212 = ssub.s32 %s15, 2
        // Predicated region
        $region45: #{tpu_custom_call.1} parent=43 // pred_check
          %p2213 = pneg %p91
        $region46: #{tpu_custom_call.1} parent=43 // pred_check_branch
          %2215 = sbr.rel (%p2213) target = $region48
        $region47: #{tpu_custom_call.1} parent=43 // pred_region
          %s2216 = sand.u32 %s76, 1
          %s2217 = scalar_lea.sflag [#allocation4], %s2216
          %s2218 = sand.u32 %s76, 1
          %s2219 = smul.addr %s2218, 64
          %s2220 = scalar_lea.vmem [#allocation7], %s2219
          %2221 = dma.done %s2217, 1024
        $region48: #{tpu_custom_call.1} parent=43 // pred_fallthru
          _
      $region44: #{tpu_custom_call.1} parent=5 // pred_fallthru
        _
    $region6: #{tpu_custom_call.1} parent=1 // loop_footer
      %s19 = sadd.s32 1, %s15
    $region7: #{tpu_custom_call.1} parent=1 // loop_footer_branch
      %14 = sbr.rel target = $region3
    $region8: #{tpu_custom_call.1} parent=1 // loop_exit
      _
    %2222 = vsyncpa [#allocation3], 1
    %s2223 = scalar_lea.sflag [#allocation3], 1
    %2224 = vsyncpa %s2223, 1
    %2225 = vsyncpa [#allocation6], 1
    %2226 = vsyncpa [#allocation4], 1
    %s2227 = scalar_lea.sflag [#allocation4], 1
    %2228 = vsyncpa %s2227, 1

</llo_original>
